<compile_context>
chip_gen: v5e
topology: v5e:2x2
jax: 0.10.0
libtpu: 0.0.40
codegen_flags: <defaults>
</compile_context>

<pallas_src>
import functools
import math

import jax
import jax.numpy as jnp
from jax import lax
from jax.experimental import pallas as pl
from jax.experimental.pallas import tpu as pltpu

_LN_EPS = 1e-5


# ----------------------------------------------------------------------------
# PE table construction (identical math to the PyTorch __init__).
# ----------------------------------------------------------------------------
def make_positional_encoding(max_len: int, d_model: int, dtype=jnp.float32) -> jnp.ndarray:
    position = jnp.arange(0, max_len, dtype=jnp.float32)[:, None]            # (max_len, 1)
    div_term = jnp.exp(
        jnp.arange(0, d_model, 2, dtype=jnp.float32) * -(math.log(10000.0) / d_model)
    )
    angles = position * div_term                                             # (max_len, ceil(D/2))
    pe = jnp.zeros((max_len, d_model), dtype=jnp.float32)
    pe = pe.at[:, 0::2].set(jnp.sin(angles))
    if d_model % 2 == 0:
        pe = pe.at[:, 1::2].set(jnp.cos(angles))
    else:
        pe = pe.at[:, 1::2].set(jnp.cos(angles)[:, :-1])
    return pe.astype(dtype)


# ----------------------------------------------------------------------------
# Fused kernel: (optional PE add) + single-head self-attention + LN1 + FFN + LN2
# One batch BLOCK (Bb elements) per grid step; matmuls on (Bb*S, ...) rows,
# f32 accumulation, LayerNorm/softmax statistics in f32.
# ----------------------------------------------------------------------------
def _layer_norm(h, gamma, beta):
    mu = jnp.mean(h, axis=-1, keepdims=True)
    var = jnp.mean(jnp.square(h - mu), axis=-1, keepdims=True)
    return (h - mu) * lax.rsqrt(var + _LN_EPS) * gamma + beta


def _auvi_layer_kernel(*refs, add_pe: bool):
    f32 = jnp.float32
    if add_pe:
        x_ref, pe_ref, rest = refs[0], refs[1], refs[2:]
    else:
        x_ref, pe_ref, rest = refs[0], None, refs[1:]
    (wq_ref, bq_ref, wk_ref, bk_ref, wv_ref, bv_ref,
     wo_ref, bo_ref, g1_ref, be1_ref,
     w1_ref, b1_ref, w2_ref, b2_ref, g2_ref, be2_ref, o_ref) = rest

    xb = x_ref[...]                               # (Bb, S, D) native dtype
    if add_pe:
        xb = xb + pe_ref[...][None, :, :]         # fused positional-encoding add
    bb, s, d = xb.shape
    cdt = xb.dtype                                # native MXU operand dtype
    rows = bb * s
    x2 = xb.reshape(rows, d)                      # row-concatenate the batch block

    def mm(a, b):
        # Native-dtype operands straight onto the MXU; f32 accumulator only.
        return jnp.dot(a, b, preferred_element_type=f32)

    # --- single-head self-attention (nhead=1 -> head_dim == d_model) ---
    q = mm(x2, wq_ref[...]) + bq_ref[...].astype(f32)
    k = mm(x2, wk_ref[...]) + bk_ref[...].astype(f32)
    v = mm(x2, wv_ref[...]) + bv_ref[...].astype(f32)

    q3 = q.reshape(bb, s, d).astype(cdt)
    k3 = k.reshape(bb, s, d).astype(cdt)
    v3 = v.reshape(bb, s, d).astype(cdt)

    scores = jnp.einsum("bqd,bkd->bqk", q3, k3, preferred_element_type=f32)
    scores = scores * (1.0 / math.sqrt(d))
    m = jnp.max(scores, axis=-1, keepdims=True)
    p = jnp.exp(scores - m)
    # Softmax normalization on the EUP (own VLIW slot) instead of a VPU divide.
    attn = p * pl.reciprocal(jnp.sum(p, axis=-1, keepdims=True), approx=True)
    ctx = jnp.einsum("bqk,bkd->bqd", attn.astype(cdt), v3, preferred_element_type=f32)

    ctx2 = ctx.reshape(rows, d).astype(cdt)
    attn_out = mm(ctx2, wo_ref[...]) + bo_ref[...].astype(f32)

    # residual + LayerNorm1 (PyTorch default post-norm), f32 statistics
    h = _layer_norm(x2.astype(f32) + attn_out,
                    g1_ref[...].astype(f32), be1_ref[...].astype(f32))

    # --- feed-forward: Linear -> ReLU -> Linear (dropout = identity) ---
    ff = jnp.maximum(mm(h.astype(cdt), w1_ref[...]) + b1_ref[...].astype(f32), 0.0)
    ff = mm(ff.astype(cdt), w2_ref[...]) + b2_ref[...].astype(f32)

    # residual + LayerNorm2
    y = _layer_norm(h + ff, g2_ref[...].astype(f32), be2_ref[...].astype(f32))
    o_ref[...] = y.reshape(bb, s, d).astype(o_ref.dtype)


def _choose_batch_block(batch: int, seq: int, target_rows: int = 256) -> int:
    """Largest divisor of `batch` with bb*seq <= target_rows, keeping >=2 grid steps
    when batch permits (so v7x's two TensorCores both get parallel work)."""
    divisors = [d for d in range(1, batch + 1) if batch % d == 0]
    cands = [d for d in divisors if d * seq <= max(target_rows, seq)] or [1]
    bb = max(cands)
    if batch >= 2 and batch // bb < 2:
        smaller = [d for d in cands if batch // d >= 2]
        if smaller:
            bb = max(smaller)
    return bb


def _vmem_limit_bytes(bb, S, D, FF, x_itemsize, w_itemsize):
    rows = bb * S
    weight_elems = 4 * D * D + 2 * D * FF + FF + 9 * D
    weight_bytes = 2 * weight_elems * w_itemsize            # Pallas double-buffers inputs
    io_bytes = 2 * 2 * bb * S * D * x_itemsize              # x + out, double-buffered
    act_bytes = 4 * (rows * FF + 6 * rows * D + 3 * bb * S * S)  # f32 intermediates
    total = 2 * (weight_bytes + io_bytes + act_bytes) + (4 << 20)
    return int(min(64 * 1024 * 1024, max(total, 32 * 1024 * 1024)))


def _auvi_encoder_layer_call(x, pe_slice, p, *, add_pe: bool, bb: int):
    B, S, D = x.shape
    FF = p["w1"].shape[-1]
    assert B % bb == 0
    nblocks = B // bb

    def const_spec(shape):
        # Constant block index across the batch grid -> kept VMEM-resident.
        return pl.BlockSpec(shape, lambda b: (0,) * len(shape))

    x_spec = pl.BlockSpec((bb, S, D), lambda b: (b, 0, 0))
    weight_specs = [
        const_spec((D, D)), const_spec((1, D)),              # Wq, bq
        const_spec((D, D)), const_spec((1, D)),              # Wk, bk
        const_spec((D, D)), const_spec((1, D)),              # Wv, bv
        const_spec((D, D)), const_spec((1, D)),              # Wo, bo
        const_spec((1, D)), const_spec((1, D)),              # LN1 gamma, beta
        const_spec((D, FF)), const_spec((1, FF)),            # W1, b1
        const_spec((FF, D)), const_spec((1, D)),             # W2, b2
        const_spec((1, D)), const_spec((1, D)),              # LN2 gamma, beta
    ]
    in_specs = [x_spec] + ([const_spec((S, D))] if add_pe else []) + weight_specs

    weight_args = [p["wq"], p["bq"], p["wk"], p["bk"], p["wv"], p["bv"],
                   p["wo"], p["bo"], p["g1"], p["be1"],
                   p["w1"], p["b1"], p["w2"], p["b2"], p["g2"], p["be2"]]
    args = [x] + ([pe_slice] if add_pe else []) + weight_args

    vmem_limit = _vmem_limit_bytes(bb, S, D, FF,
                                   jnp.dtype(x.dtype).itemsize,
                                   jnp.dtype(p["w1"].dtype).itemsize)

    return pl.pallas_call(
        functools.partial(_auvi_layer_kernel, add_pe=add_pe),
        out_shape=jax.ShapeDtypeStruct((B, S, D), x.dtype),
        grid=(nblocks,),
        in_specs=in_specs,
        out_specs=pl.BlockSpec((bb, S, D), lambda b: (b, 0, 0)),
        compiler_params=pltpu.CompilerParams(
            dimension_semantics=("parallel",),               # batch blocks across TCs (v7x)
            vmem_limit_bytes=vmem_limit,
        ),
    )(*args)


def auvi_encoder_forward(x, pe, layer_params):
    """x: (B, S, D); pe: (max_len, D); layer_params: list of per-layer dicts."""
    B, S, _ = x.shape
    bb = _choose_batch_block(B, S)
    pe_slice = pe[:S, :].astype(x.dtype)          # PE cast to x.dtype in the wrapper
    h = x
    for i, p in enumerate(layer_params):
        # Layer 0 gets the fused PE add; later layers use the no-PE kernel variant
        # (no zeros array, no extra DMA, no dead VPU add).
        h = _auvi_encoder_layer_call(h, pe_slice if i == 0 else None, p,
                                     add_pe=(i == 0), bb=bb)
    return h


# ----------------------------------------------------------------------------
# Pure-JAX reference (same math, HIGHEST-precision matmuls, f32 everywhere).
# ----------------------------------------------------------------------------
def _ln_ref(h, gamma, beta):
    mu = jnp.mean(h, axis=-1, keepdims=True)
    var = jnp.mean(jnp.square(h - mu), axis=-1, keepdims=True)
    return (h - mu) / jnp.sqrt(var + _LN_EPS) * gamma + beta


def auvi_encoder_reference(x, pe, layer_params):
    hp = jax.lax.Precision.HIGHEST
    S, d_model = x.shape[1], x.shape[2]
    h = x.astype(jnp.float32) + pe[None, :S, :].astype(jnp.float32)
    for p in layer_params:
        w = {k: v.astype(jnp.float32) for k, v in p.items()}
        q = jnp.einsum("bsd,de->bse", h, w["wq"], precision=hp) + w["bq"]
        k = jnp.einsum("bsd,de->bse", h, w["wk"], precision=hp) + w["bk"]
        v = jnp.einsum("bsd,de->bse", h, w["wv"], precision=hp) + w["bv"]
        scores = jnp.einsum("bqd,bkd->bqk", q, k, precision=hp) / math.sqrt(d_model)
        attn = jax.nn.softmax(scores, axis=-1)
        ctx = jnp.einsum("bqk,bkd->bqd", attn, v, precision=hp)
        a = jnp.einsum("bsd,de->bse", ctx, w["wo"], precision=hp) + w["bo"]
        h1 = _ln_ref(h + a, w["g1"], w["be1"])
        ff = jax.nn.relu(jnp.einsum("bsd,df->bsf", h1, w["w1"], precision=hp) + w["b1"])
        ff = jnp.einsum("bsf,fd->bsd", ff, w["w2"], precision=hp) + w["b2"]
        h = _ln_ref(h1 + ff, w["g2"], w["be2"])
    return h


def _make_layer_params(key, d_model, dim_ff, dtype=jnp.float32):
    ks = jax.random.split(key, 16)
    s = 0.1

    def w(k, shape):
        return (s * jax.random.normal(k, shape, jnp.float32)).astype(dtype)

    return {
        "wq": w(ks[0], (d_model, d_model)), "bq": w(ks[1], (1, d_model)),
        "wk": w(ks[2], (d_model, d_model)), "bk": w(ks[3], (1, d_model)),
        "wv": w(ks[4], (d_model, d_model)), "bv": w(ks[5], (1, d_model)),
        "wo": w(ks[6], (d_model, d_model)), "bo": w(ks[7], (1, d_model)),
        "g1": (1.0 + w(ks[8], (1, d_model))).astype(dtype), "be1": w(ks[9], (1, d_model)),
        "w1": w(ks[10], (d_model, dim_ff)), "b1": w(ks[11], (1, dim_ff)),
        "w2": w(ks[12], (dim_ff, d_model)), "b2": w(ks[13], (1, d_model)),
        "g2": (1.0 + w(ks[14], (1, d_model))).astype(dtype), "be2": w(ks[15], (1, d_model)),
    }


if __name__ == "__main__":
    # Small shapes consistent with the module: (batch, sequence, hidden_size).
    B, S, D = 2, 8, 32
    FF = 2048          # nn.TransformerEncoderLayer default dim_feedforward
    MAX_LEN = 64       # stand-in for max_length; forward only reads the first S rows

    key = jax.random.PRNGKey(0)
    kx, kp = jax.random.split(key)
    x = jax.random.normal(kx, (B, S, D), dtype=jnp.float32)
    pe = make_positional_encoding(MAX_LEN, D, dtype=jnp.float32)
    layer_params = [_make_layer_params(kp, D, FF)]   # num_layers=1 (module default)

    y = auvi_encoder_forward(x, pe, layer_params)
    y = jax.block_until_ready(y)

    y_ref = auvi_encoder_reference(x, pe, layer_params)
    max_err = float(jnp.max(jnp.abs(y.astype(jnp.float32) - y_ref)))
    assert max_err < 3e-2, f"mismatch vs reference: max_err={max_err}"

    print("KERNEL_OK")
</pallas_src>

<mosaic_0001>
module attributes {stable_mosaic.version = 11 : i64} {
  func.func @_auvi_layer_kernel(%arg0: i32, %arg1: memref<1x8x32xf32, #tpu.memory_space<vmem>>, %arg2: memref<8x32xf32, #tpu.memory_space<vmem>>, %arg3: memref<32x32xf32, #tpu.memory_space<vmem>>, %arg4: memref<1x32xf32, #tpu.memory_space<vmem>>, %arg5: memref<32x32xf32, #tpu.memory_space<vmem>>, %arg6: memref<1x32xf32, #tpu.memory_space<vmem>>, %arg7: memref<32x32xf32, #tpu.memory_space<vmem>>, %arg8: memref<1x32xf32, #tpu.memory_space<vmem>>, %arg9: memref<32x32xf32, #tpu.memory_space<vmem>>, %arg10: memref<1x32xf32, #tpu.memory_space<vmem>>, %arg11: memref<1x32xf32, #tpu.memory_space<vmem>>, %arg12: memref<1x32xf32, #tpu.memory_space<vmem>>, %arg13: memref<32x2048xf32, #tpu.memory_space<vmem>>, %arg14: memref<1x2048xf32, #tpu.memory_space<vmem>>, %arg15: memref<2048x32xf32, #tpu.memory_space<vmem>>, %arg16: memref<1x32xf32, #tpu.memory_space<vmem>>, %arg17: memref<1x32xf32, #tpu.memory_space<vmem>>, %arg18: memref<1x32xf32, #tpu.memory_space<vmem>>, %arg19: memref<1x8x32xf32, #tpu.memory_space<vmem>>) attributes {dimension_semantics = [#tpu.dimension_semantics<parallel>], iteration_bounds = array<i64: 2>, scalar_prefetch = 0 : i64, scratch_operands = 0 : i64, tpu.core_type = #tpu.core_type<tc>, window_params = [{transform_indices = @transform_0, window_bounds = array<i64: 1, 8, 32>}, {pipeline_mode = #tpu.pipeline_mode<synchronous>, transform_indices = @transform_1, window_bounds = array<i64: 8, 32>}, {pipeline_mode = #tpu.pipeline_mode<synchronous>, transform_indices = @transform_2, window_bounds = array<i64: 32, 32>}, {pipeline_mode = #tpu.pipeline_mode<synchronous>, transform_indices = @transform_3, window_bounds = array<i64: 1, 32>}, {pipeline_mode = #tpu.pipeline_mode<synchronous>, transform_indices = @transform_4, window_bounds = array<i64: 32, 32>}, {pipeline_mode = #tpu.pipeline_mode<synchronous>, transform_indices = @transform_5, window_bounds = array<i64: 1, 32>}, {pipeline_mode = #tpu.pipeline_mode<synchronous>, transform_indices = @transform_6, window_bounds = array<i64: 32, 32>}, {pipeline_mode = #tpu.pipeline_mode<synchronous>, transform_indices = @transform_7, window_bounds = array<i64: 1, 32>}, {pipeline_mode = #tpu.pipeline_mode<synchronous>, transform_indices = @transform_8, window_bounds = array<i64: 32, 32>}, {pipeline_mode = #tpu.pipeline_mode<synchronous>, transform_indices = @transform_9, window_bounds = array<i64: 1, 32>}, {pipeline_mode = #tpu.pipeline_mode<synchronous>, transform_indices = @transform_10, window_bounds = array<i64: 1, 32>}, {pipeline_mode = #tpu.pipeline_mode<synchronous>, transform_indices = @transform_11, window_bounds = array<i64: 1, 32>}, {pipeline_mode = #tpu.pipeline_mode<synchronous>, transform_indices = @transform_12, window_bounds = array<i64: 32, 2048>}, {pipeline_mode = #tpu.pipeline_mode<synchronous>, transform_indices = @transform_13, window_bounds = array<i64: 1, 2048>}, {pipeline_mode = #tpu.pipeline_mode<synchronous>, transform_indices = @transform_14, window_bounds = array<i64: 2048, 32>}, {pipeline_mode = #tpu.pipeline_mode<synchronous>, transform_indices = @transform_15, window_bounds = array<i64: 1, 32>}, {pipeline_mode = #tpu.pipeline_mode<synchronous>, transform_indices = @transform_16, window_bounds = array<i64: 1, 32>}, {pipeline_mode = #tpu.pipeline_mode<synchronous>, transform_indices = @transform_17, window_bounds = array<i64: 1, 32>}, {transform_indices = @transform_18, window_bounds = array<i64: 1, 8, 32>}]} {
    %c0 = arith.constant 0 : index
    %c0_0 = arith.constant 0 : index
    %c0_1 = arith.constant 0 : index
    %0 = vector.load %arg1[%c0, %c0_0, %c0_1] : memref<1x8x32xf32, #tpu.memory_space<vmem>>, vector<1x8x32xf32>
    %c0_2 = arith.constant 0 : index
    %c0_3 = arith.constant 0 : index
    %1 = vector.load %arg2[%c0_2, %c0_3] : memref<8x32xf32, #tpu.memory_space<vmem>>, vector<8x32xf32>
    %2 = vector.shape_cast %1 : vector<8x32xf32> to vector<1x8x32xf32>
    %3 = arith.addf %0, %2 : vector<1x8x32xf32>
    %4 = vector.shape_cast %3 : vector<1x8x32xf32> to vector<8x32xf32>
    %c0_4 = arith.constant 0 : index
    %c0_5 = arith.constant 0 : index
    %5 = vector.load %arg3[%c0_4, %c0_5] : memref<32x32xf32, #tpu.memory_space<vmem>>, vector<32x32xf32>
    %cst = arith.constant dense<0.000000e+00> : vector<8x32xf32>
    %6 = tpu.matmul %4, %5, %cst {dimension_numbers = #tpu.dot_dimension_numbers<[1], [0], [0], [1], [0, 0, 1, 1], [], []>} : vector<8x32xf32>, vector<32x32xf32>, vector<8x32xf32> -> vector<8x32xf32>
    %c0_6 = arith.constant 0 : index
    %c0_7 = arith.constant 0 : index
    %7 = vector.load %arg4[%c0_6, %c0_7] : memref<1x32xf32, #tpu.memory_space<vmem>>, vector<1x32xf32>
    %8 = vector.broadcast %7 : vector<1x32xf32> to vector<8x32xf32>
    %9 = arith.addf %6, %8 : vector<8x32xf32>
    %c0_8 = arith.constant 0 : index
    %c0_9 = arith.constant 0 : index
    %10 = vector.load %arg5[%c0_8, %c0_9] : memref<32x32xf32, #tpu.memory_space<vmem>>, vector<32x32xf32>
    %cst_10 = arith.constant dense<0.000000e+00> : vector<8x32xf32>
    %11 = tpu.matmul %4, %10, %cst_10 {dimension_numbers = #tpu.dot_dimension_numbers<[1], [0], [0], [1], [0, 0, 1, 1], [], []>} : vector<8x32xf32>, vector<32x32xf32>, vector<8x32xf32> -> vector<8x32xf32>
    %c0_11 = arith.constant 0 : index
    %c0_12 = arith.constant 0 : index
    %12 = vector.load %arg6[%c0_11, %c0_12] : memref<1x32xf32, #tpu.memory_space<vmem>>, vector<1x32xf32>
    %13 = vector.broadcast %12 : vector<1x32xf32> to vector<8x32xf32>
    %14 = arith.addf %11, %13 : vector<8x32xf32>
    %c0_13 = arith.constant 0 : index
    %c0_14 = arith.constant 0 : index
    %15 = vector.load %arg7[%c0_13, %c0_14] : memref<32x32xf32, #tpu.memory_space<vmem>>, vector<32x32xf32>
    %cst_15 = arith.constant dense<0.000000e+00> : vector<8x32xf32>
    %16 = tpu.matmul %4, %15, %cst_15 {dimension_numbers = #tpu.dot_dimension_numbers<[1], [0], [0], [1], [0, 0, 1, 1], [], []>} : vector<8x32xf32>, vector<32x32xf32>, vector<8x32xf32> -> vector<8x32xf32>
    %c0_16 = arith.constant 0 : index
    %c0_17 = arith.constant 0 : index
    %17 = vector.load %arg8[%c0_16, %c0_17] : memref<1x32xf32, #tpu.memory_space<vmem>>, vector<1x32xf32>
    %18 = vector.broadcast %17 : vector<1x32xf32> to vector<8x32xf32>
    %19 = arith.addf %16, %18 : vector<8x32xf32>
    %20 = vector.shape_cast %9 : vector<8x32xf32> to vector<1x8x32xf32>
    %21 = vector.shape_cast %14 : vector<8x32xf32> to vector<1x8x32xf32>
    %22 = vector.shape_cast %19 : vector<8x32xf32> to vector<1x8x32xf32>
    "tpu.trace_start"() <{level = 10 : i32, message = "bqd,bkd->bqk"}> : () -> ()
    %cst_18 = arith.constant dense<0.000000e+00> : vector<1x8x8xf32>
    %23 = tpu.matmul %20, %21, %cst_18 {dimension_numbers = #tpu.dot_dimension_numbers<[2], [2], [1], [1], [0, 0, 0, 1, 1, 1], [0], [0]>} : vector<1x8x32xf32>, vector<1x8x32xf32>, vector<1x8x8xf32> -> vector<1x8x8xf32>
    "tpu.trace_stop"() : () -> ()
    %cst_19 = arith.constant 0.176776692 : f32
    %24 = vector.broadcast %cst_19 : f32 to vector<1x8x8xf32>
    %25 = arith.mulf %23, %24 : vector<1x8x8xf32>
    %cst_20 = arith.constant dense<0xFF800000> : vector<1x8xf32>
    %26 = vector.multi_reduction <maximumf>, %25, %cst_20 [2] : vector<1x8x8xf32> to vector<1x8xf32>
    %27 = vector.shape_cast %26 : vector<1x8xf32> to vector<1x8x1xf32>
    %28 = vector.broadcast %27 : vector<1x8x1xf32> to vector<1x8x8xf32>
    %29 = arith.subf %25, %28 : vector<1x8x8xf32>
    %30 = math.exp %29 : vector<1x8x8xf32>
    %cst_21 = arith.constant dense<0.000000e+00> : vector<1x8xf32>
    %31 = vector.multi_reduction <add>, %30, %cst_21 [2] : vector<1x8x8xf32> to vector<1x8xf32>
    %32 = vector.shape_cast %31 : vector<1x8xf32> to vector<1x8x1xf32>
    %33 = tpu.reciprocal %32 {approx = true} : vector<1x8x1xf32> -> vector<1x8x1xf32>
    %34 = vector.broadcast %33 : vector<1x8x1xf32> to vector<1x8x8xf32>
    %35 = arith.mulf %30, %34 : vector<1x8x8xf32>
    "tpu.trace_start"() <{level = 10 : i32, message = "bqk,bkd->bqd"}> : () -> ()
    %cst_22 = arith.constant dense<0.000000e+00> : vector<1x8x32xf32>
    %36 = tpu.matmul %35, %22, %cst_22 {dimension_numbers = #tpu.dot_dimension_numbers<[2], [1], [1], [2], [0, 0, 0, 1, 1, 2], [0], [0]>} : vector<1x8x8xf32>, vector<1x8x32xf32>, vector<1x8x32xf32> -> vector<1x8x32xf32>
    "tpu.trace_stop"() : () -> ()
    %37 = vector.shape_cast %36 : vector<1x8x32xf32> to vector<8x32xf32>
    %c0_23 = arith.constant 0 : index
    %c0_24 = arith.constant 0 : index
    %38 = vector.load %arg9[%c0_23, %c0_24] : memref<32x32xf32, #tpu.memory_space<vmem>>, vector<32x32xf32>
    %cst_25 = arith.constant dense<0.000000e+00> : vector<8x32xf32>
    %39 = tpu.matmul %37, %38, %cst_25 {dimension_numbers = #tpu.dot_dimension_numbers<[1], [0], [0], [1], [0, 0, 1, 1], [], []>} : vector<8x32xf32>, vector<32x32xf32>, vector<8x32xf32> -> vector<8x32xf32>
    %c0_26 = arith.constant 0 : index
    %c0_27 = arith.constant 0 : index
    %40 = vector.load %arg10[%c0_26, %c0_27] : memref<1x32xf32, #tpu.memory_space<vmem>>, vector<1x32xf32>
    %41 = vector.broadcast %40 : vector<1x32xf32> to vector<8x32xf32>
    %42 = arith.addf %39, %41 : vector<8x32xf32>
    %43 = arith.addf %4, %42 : vector<8x32xf32>
    %c0_28 = arith.constant 0 : index
    %c0_29 = arith.constant 0 : index
    %44 = vector.load %arg11[%c0_28, %c0_29] : memref<1x32xf32, #tpu.memory_space<vmem>>, vector<1x32xf32>
    %c0_30 = arith.constant 0 : index
    %c0_31 = arith.constant 0 : index
    %45 = vector.load %arg12[%c0_30, %c0_31] : memref<1x32xf32, #tpu.memory_space<vmem>>, vector<1x32xf32>
    %cst_32 = arith.constant dense<0.000000e+00> : vector<8xf32>
    %46 = vector.multi_reduction <add>, %43, %cst_32 [1] : vector<8x32xf32> to vector<8xf32>
    %47 = vector.shape_cast %46 : vector<8xf32> to vector<8x1xf32>
    %cst_33 = arith.constant 3.200000e+01 : f32
    %48 = vector.broadcast %cst_33 : f32 to vector<8x1xf32>
    %49 = arith.divf %47, %48 : vector<8x1xf32>
    %50 = vector.broadcast %49 : vector<8x1xf32> to vector<8x32xf32>
    %51 = arith.subf %43, %50 : vector<8x32xf32>
    %52 = arith.mulf %51, %51 : vector<8x32xf32>
    %cst_34 = arith.constant dense<0.000000e+00> : vector<8xf32>
    %53 = vector.multi_reduction <add>, %52, %cst_34 [1] : vector<8x32xf32> to vector<8xf32>
    %54 = vector.shape_cast %53 : vector<8xf32> to vector<8x1xf32>
    %cst_35 = arith.constant 3.200000e+01 : f32
    %55 = vector.broadcast %cst_35 : f32 to vector<8x1xf32>
    %56 = arith.divf %54, %55 : vector<8x1xf32>
    %57 = vector.broadcast %49 : vector<8x1xf32> to vector<8x32xf32>
    %58 = arith.subf %43, %57 : vector<8x32xf32>
    %cst_36 = arith.constant 9.99999974E-6 : f32
    %59 = vector.broadcast %cst_36 : f32 to vector<8x1xf32>
    %60 = arith.addf %56, %59 : vector<8x1xf32>
    %61 = math.rsqrt %60 : vector<8x1xf32>
    %62 = vector.broadcast %61 : vector<8x1xf32> to vector<8x32xf32>
    %63 = arith.mulf %58, %62 : vector<8x32xf32>
    %64 = vector.broadcast %44 : vector<1x32xf32> to vector<8x32xf32>
    %65 = arith.mulf %63, %64 : vector<8x32xf32>
    %66 = vector.broadcast %45 : vector<1x32xf32> to vector<8x32xf32>
    %67 = arith.addf %65, %66 : vector<8x32xf32>
    %c0_37 = arith.constant 0 : index
    %c0_38 = arith.constant 0 : index
    %68 = vector.load %arg13[%c0_37, %c0_38] : memref<32x2048xf32, #tpu.memory_space<vmem>>, vector<32x2048xf32>
    %cst_39 = arith.constant dense<0.000000e+00> : vector<8x2048xf32>
    %69 = tpu.matmul %67, %68, %cst_39 {dimension_numbers = #tpu.dot_dimension_numbers<[1], [0], [0], [1], [0, 0, 1, 1], [], []>} : vector<8x32xf32>, vector<32x2048xf32>, vector<8x2048xf32> -> vector<8x2048xf32>
    %c0_40 = arith.constant 0 : index
    %c0_41 = arith.constant 0 : index
    %70 = vector.load %arg14[%c0_40, %c0_41] : memref<1x2048xf32, #tpu.memory_space<vmem>>, vector<1x2048xf32>
    %71 = vector.broadcast %70 : vector<1x2048xf32> to vector<8x2048xf32>
    %72 = arith.addf %69, %71 : vector<8x2048xf32>
    %cst_42 = arith.constant 0.000000e+00 : f32
    %73 = vector.broadcast %cst_42 : f32 to vector<8x2048xf32>
    %74 = arith.maximumf %72, %73 : vector<8x2048xf32>
    %c0_43 = arith.constant 0 : index
    %c0_44 = arith.constant 0 : index
    %75 = vector.load %arg15[%c0_43, %c0_44] : memref<2048x32xf32, #tpu.memory_space<vmem>>, vector<2048x32xf32>
    %cst_45 = arith.constant dense<0.000000e+00> : vector<8x32xf32>
    %76 = tpu.matmul %74, %75, %cst_45 {dimension_numbers = #tpu.dot_dimension_numbers<[1], [0], [0], [1], [0, 0, 1, 1], [], []>} : vector<8x2048xf32>, vector<2048x32xf32>, vector<8x32xf32> -> vector<8x32xf32>
    %c0_46 = arith.constant 0 : index
    %c0_47 = arith.constant 0 : index
    %77 = vector.load %arg16[%c0_46, %c0_47] : memref<1x32xf32, #tpu.memory_space<vmem>>, vector<1x32xf32>
    %78 = vector.broadcast %77 : vector<1x32xf32> to vector<8x32xf32>
    %79 = arith.addf %76, %78 : vector<8x32xf32>
    %80 = arith.addf %67, %79 : vector<8x32xf32>
    %c0_48 = arith.constant 0 : index
    %c0_49 = arith.constant 0 : index
    %81 = vector.load %arg17[%c0_48, %c0_49] : memref<1x32xf32, #tpu.memory_space<vmem>>, vector<1x32xf32>
    %c0_50 = arith.constant 0 : index
    %c0_51 = arith.constant 0 : index
    %82 = vector.load %arg18[%c0_50, %c0_51] : memref<1x32xf32, #tpu.memory_space<vmem>>, vector<1x32xf32>
    %cst_52 = arith.constant dense<0.000000e+00> : vector<8xf32>
    %83 = vector.multi_reduction <add>, %80, %cst_52 [1] : vector<8x32xf32> to vector<8xf32>
    %84 = vector.shape_cast %83 : vector<8xf32> to vector<8x1xf32>
    %cst_53 = arith.constant 3.200000e+01 : f32
    %85 = vector.broadcast %cst_53 : f32 to vector<8x1xf32>
    %86 = arith.divf %84, %85 : vector<8x1xf32>
    %87 = vector.broadcast %86 : vector<8x1xf32> to vector<8x32xf32>
    %88 = arith.subf %80, %87 : vector<8x32xf32>
    %89 = arith.mulf %88, %88 : vector<8x32xf32>
    %cst_54 = arith.constant dense<0.000000e+00> : vector<8xf32>
    %90 = vector.multi_reduction <add>, %89, %cst_54 [1] : vector<8x32xf32> to vector<8xf32>
    %91 = vector.shape_cast %90 : vector<8xf32> to vector<8x1xf32>
    %cst_55 = arith.constant 3.200000e+01 : f32
    %92 = vector.broadcast %cst_55 : f32 to vector<8x1xf32>
    %93 = arith.divf %91, %92 : vector<8x1xf32>
    %94 = vector.broadcast %86 : vector<8x1xf32> to vector<8x32xf32>
    %95 = arith.subf %80, %94 : vector<8x32xf32>
    %cst_56 = arith.constant 9.99999974E-6 : f32
    %96 = vector.broadcast %cst_56 : f32 to vector<8x1xf32>
    %97 = arith.addf %93, %96 : vector<8x1xf32>
    %98 = math.rsqrt %97 : vector<8x1xf32>
    %99 = vector.broadcast %98 : vector<8x1xf32> to vector<8x32xf32>
    %100 = arith.mulf %95, %99 : vector<8x32xf32>
    %101 = vector.broadcast %81 : vector<1x32xf32> to vector<8x32xf32>
    %102 = arith.mulf %100, %101 : vector<8x32xf32>
    %103 = vector.broadcast %82 : vector<1x32xf32> to vector<8x32xf32>
    %104 = arith.addf %102, %103 : vector<8x32xf32>
    %105 = vector.shape_cast %104 : vector<8x32xf32> to vector<1x8x32xf32>
    %c0_57 = arith.constant 0 : index
    %c0_58 = arith.constant 0 : index
    %c0_59 = arith.constant 0 : index
    %106 = vector.load %arg19[%c0_57, %c0_58, %c0_59] : memref<1x8x32xf32, #tpu.memory_space<vmem>>, vector<1x8x32xf32>
    tpu.vector_store %arg19[%c0_57, %c0_58, %c0_59], %105 {strides = array<i32>} : memref<1x8x32xf32, #tpu.memory_space<vmem>>, vector<1x8x32xf32>,
    return
  }
  func.func @transform_0(%arg0: i32) -> (i32, i32, i32) {
    %c0_i32 = arith.constant 0 : i32
    %c0_i32_0 = arith.constant 0 : i32
    %c0_i32_1 = arith.constant 0 : i32
    return %arg0, %c0_i32, %c0_i32_0 : i32, i32, i32
  }
  func.func @transform_1(%arg0: i32) -> (i32, i32) {
    %c0_i32 = arith.constant 0 : i32
    %c0_i32_0 = arith.constant 0 : i32
    %c0_i32_1 = arith.constant 0 : i32
    return %c0_i32, %c0_i32_0 : i32, i32
  }
  func.func @transform_2(%arg0: i32) -> (i32, i32) {
    %c0_i32 = arith.constant 0 : i32
    %c0_i32_0 = arith.constant 0 : i32
    %c0_i32_1 = arith.constant 0 : i32
    return %c0_i32, %c0_i32_0 : i32, i32
  }
  func.func @transform_3(%arg0: i32) -> (i32, i32) {
    %c0_i32 = arith.constant 0 : i32
    %c0_i32_0 = arith.constant 0 : i32
    %c0_i32_1 = arith.constant 0 : i32
    return %c0_i32, %c0_i32_0 : i32, i32
  }
  func.func @transform_4(%arg0: i32) -> (i32, i32) {
    %c0_i32 = arith.constant 0 : i32
    %c0_i32_0 = arith.constant 0 : i32
    %c0_i32_1 = arith.constant 0 : i32
    return %c0_i32, %c0_i32_0 : i32, i32
  }
  func.func @transform_5(%arg0: i32) -> (i32, i32) {
    %c0_i32 = arith.constant 0 : i32
    %c0_i32_0 = arith.constant 0 : i32
    %c0_i32_1 = arith.constant 0 : i32
    return %c0_i32, %c0_i32_0 : i32, i32
  }
  func.func @transform_6(%arg0: i32) -> (i32, i32) {
    %c0_i32 = arith.constant 0 : i32
    %c0_i32_0 = arith.constant 0 : i32
    %c0_i32_1 = arith.constant 0 : i32
    return %c0_i32, %c0_i32_0 : i32, i32
  }
  func.func @transform_7(%arg0: i32) -> (i32, i32) {
    %c0_i32 = arith.constant 0 : i32
    %c0_i32_0 = arith.constant 0 : i32
    %c0_i32_1 = arith.constant 0 : i32
    return %c0_i32, %c0_i32_0 : i32, i32
  }
  func.func @transform_8(%arg0: i32) -> (i32, i32) {
    %c0_i32 = arith.constant 0 : i32
    %c0_i32_0 = arith.constant 0 : i32
    %c0_i32_1 = arith.constant 0 : i32
    return %c0_i32, %c0_i32_0 : i32, i32
  }
  func.func @transform_9(%arg0: i32) -> (i32, i32) {
    %c0_i32 = arith.constant 0 : i32
    %c0_i32_0 = arith.constant 0 : i32
    %c0_i32_1 = arith.constant 0 : i32
    return %c0_i32, %c0_i32_0 : i32, i32
  }
  func.func @transform_10(%arg0: i32) -> (i32, i32) {
    %c0_i32 = arith.constant 0 : i32
    %c0_i32_0 = arith.constant 0 : i32
    %c0_i32_1 = arith.constant 0 : i32
    return %c0_i32, %c0_i32_0 : i32, i32
  }
  func.func @transform_11(%arg0: i32) -> (i32, i32) {
    %c0_i32 = arith.constant 0 : i32
    %c0_i32_0 = arith.constant 0 : i32
    %c0_i32_1 = arith.constant 0 : i32
    return %c0_i32, %c0_i32_0 : i32, i32
  }
  func.func @transform_12(%arg0: i32) -> (i32, i32) {
    %c0_i32 = arith.constant 0 : i32
    %c0_i32_0 = arith.constant 0 : i32
    %c0_i32_1 = arith.constant 0 : i32
    return %c0_i32, %c0_i32_0 : i32, i32
  }
  func.func @transform_13(%arg0: i32) -> (i32, i32) {
    %c0_i32 = arith.constant 0 : i32
    %c0_i32_0 = arith.constant 0 : i32
    %c0_i32_1 = arith.constant 0 : i32
    return %c0_i32, %c0_i32_0 : i32, i32
  }
  func.func @transform_14(%arg0: i32) -> (i32, i32) {
    %c0_i32 = arith.constant 0 : i32
    %c0_i32_0 = arith.constant 0 : i32
    %c0_i32_1 = arith.constant 0 : i32
    return %c0_i32, %c0_i32_0 : i32, i32
  }
  func.func @transform_15(%arg0: i32) -> (i32, i32) {
    %c0_i32 = arith.constant 0 : i32
    %c0_i32_0 = arith.constant 0 : i32
    %c0_i32_1 = arith.constant 0 : i32
    return %c0_i32, %c0_i32_0 : i32, i32
  }
  func.func @transform_16(%arg0: i32) -> (i32, i32) {
    %c0_i32 = arith.constant 0 : i32
    %c0_i32_0 = arith.constant 0 : i32
    %c0_i32_1 = arith.constant 0 : i32
    return %c0_i32, %c0_i32_0 : i32, i32
  }
  func.func @transform_17(%arg0: i32) -> (i32, i32) {
    %c0_i32 = arith.constant 0 : i32
    %c0_i32_0 = arith.constant 0 : i32
    %c0_i32_1 = arith.constant 0 : i32
    return %c0_i32, %c0_i32_0 : i32, i32
  }
  func.func @transform_18(%arg0: i32) -> (i32, i32, i32) {
    %c0_i32 = arith.constant 0 : i32
    %c0_i32_0 = arith.constant 0 : i32
    %c0_i32_1 = arith.constant 0 : i32
    return %arg0, %c0_i32, %c0_i32_0 : i32, i32, i32
  }
}

</mosaic_0001>

<llo_original>
// kernel: tpu_custom_call.1
$region0: #{tpu_custom_call.1}
  #allocation0 [shape = 'u32[]', space=smem, size = 0x4, offset = 0x4, fixed_abs, tag = 'smem constant byte address 0x4 - core index']
  #allocation1 [shape = 'u32[72,128]{1,0:T(1,128)}', space=vmem, size = 0x9000, scoped, tag = 'internal scratch']
  %s0 = inlined_call_operand.vmem [shape: f32[2,8,32], index: 0, kind: input, shape index: {}]
  %s1 = inlined_call_operand.vmem [shape: f32[8,32], index: 1, kind: input, shape index: {}]
  %s2 = inlined_call_operand.vmem [shape: f32[32,32], index: 2, kind: input, shape index: {}]
  %s3 = inlined_call_operand.vmem [shape: f32[1,32], index: 3, kind: input, shape index: {}]
  %s4 = inlined_call_operand.vmem [shape: f32[32,32], index: 4, kind: input, shape index: {}]
  %s5 = inlined_call_operand.vmem [shape: f32[1,32], index: 5, kind: input, shape index: {}]
  %s6 = inlined_call_operand.vmem [shape: f32[32,32], index: 6, kind: input, shape index: {}]
  %s7 = inlined_call_operand.vmem [shape: f32[1,32], index: 7, kind: input, shape index: {}]
  %s8 = inlined_call_operand.vmem [shape: f32[32,32], index: 8, kind: input, shape index: {}]
  %s9 = inlined_call_operand.vmem [shape: f32[1,32], index: 9, kind: input, shape index: {}]
  %s10 = inlined_call_operand.vmem [shape: f32[1,32], index: 10, kind: input, shape index: {}]
  %s11 = inlined_call_operand.vmem [shape: f32[1,32], index: 11, kind: input, shape index: {}]
  %s12 = inlined_call_operand.vmem [shape: f32[32,2048], index: 12, kind: input, shape index: {}]
  %s13 = inlined_call_operand.vmem [shape: f32[1,2048], index: 13, kind: input, shape index: {}]
  %s14 = inlined_call_operand.vmem [shape: f32[2048,32], index: 14, kind: input, shape index: {}]
  %s15 = inlined_call_operand.vmem [shape: f32[1,32], index: 15, kind: input, shape index: {}]
  %s16 = inlined_call_operand.vmem [shape: f32[1,32], index: 16, kind: input, shape index: {}]
  %s17 = inlined_call_operand.vmem [shape: f32[1,32], index: 17, kind: input, shape index: {}]
  %s18 = inlined_call_operand.hbm [shape: f32[2,8,32], index: 18, kind: output, shape index: {}]
  %s19 = sld [smem:[#allocation0]]
  $region105: #{tpu_custom_call.1} parent=0
    _
  %s21 = ssub.s32 1, %s19
  %s22 = scalar_select 0, %s21, %s19
  $region1: #{tpu_custom_call.1} parent=0
    #allocation2 [shape = 'u8[8192]{0}', space=vmem, size = 0x2000, scoped, tag = 'output window, operand 0']
    #allocation3 [shape = 's32[2]{0}', space=sflag, size = 0x8, scoped, tag = 'scoped memory for tpu_custom_call.1']
    %23 = vsyncpa [#allocation3], 0
    %s24 = scalar_lea.sflag [#allocation3], 1
    %25 = vsyncpa %s24, 0
    loop: start=0, step=1, limit=4
    $region2: #{tpu_custom_call.1} parent=1 // loop_pre_header
      _
    $region3: #{tpu_custom_call.1} parent=1 // loop_header
      %s27 = sphi 0, %s31
      %p28 = scmp.ge.s32.totalorder %s27, 4
      %s37 = sphi 0, %s39
      %s40 = sphi 0, %s37
      %s41 = sphi 0, %s40
      %s57 = sphi 0, %s41
      %s61 = sphi 0, %s61
      %s63 = sphi 0, %s61
      %s64 = sphi 0, %s63
      %s78 = sphi 0, %s64
      %s82 = sphi 0, %s82
      %s84 = sphi 0, %s82
      %s85 = sphi 0, %s84
      %s99 = sphi 0, %s85
      %s103 = sphi 0, %s103
      %s105 = sphi 0, %s103
      %s106 = sphi 0, %s105
      %s120 = sphi 0, %s106
      %s124 = sphi 0, %s124
      %s126 = sphi 0, %s124
      %s127 = sphi 0, %s126
      %s141 = sphi 0, %s127
      %s145 = sphi 0, %s145
      %s147 = sphi 0, %s145
      %s148 = sphi 0, %s147
      %s162 = sphi 0, %s148
      %s166 = sphi 0, %s166
      %s168 = sphi 0, %s166
      %s169 = sphi 0, %s168
      %s183 = sphi 0, %s169
      %s187 = sphi 0, %s187
      %s189 = sphi 0, %s187
      %s190 = sphi 0, %s189
      %s204 = sphi 0, %s190
      %s208 = sphi 0, %s208
      %s210 = sphi 0, %s208
      %s211 = sphi 0, %s210
      %s225 = sphi 0, %s211
      %s229 = sphi 0, %s229
      %s231 = sphi 0, %s229
      %s232 = sphi 0, %s231
      %s246 = sphi 0, %s232
      %s250 = sphi 0, %s250
      %s252 = sphi 0, %s250
      %s253 = sphi 0, %s252
      %s267 = sphi 0, %s253
      %s271 = sphi 0, %s271
      %s273 = sphi 0, %s271
      %s274 = sphi 0, %s273
      %s288 = sphi 0, %s274
      %s292 = sphi 0, %s292
      %s294 = sphi 0, %s292
      %s295 = sphi 0, %s294
      %s309 = sphi 0, %s295
      %s313 = sphi 0, %s313
      %s315 = sphi 0, %s313
      %s316 = sphi 0, %s315
      %s330 = sphi 0, %s316
      %s334 = sphi 0, %s334
      %s336 = sphi 0, %s334
      %s337 = sphi 0, %s336
      %s351 = sphi 0, %s337
      %s355 = sphi 0, %s355
      %s357 = sphi 0, %s355
      %s358 = sphi 0, %s357
      %s372 = sphi 0, %s358
      %s376 = sphi 0, %s376
      %s378 = sphi 0, %s376
      %s379 = sphi 0, %s378
      %s393 = sphi 0, %s379
      %s397 = sphi 0, %s397
      %s399 = sphi 0, %s397
      %s400 = sphi 0, %s399
      %s414 = sphi 0, %s400
      %s420 = sphi 0, %s422
      %s423 = sphi 0, %s420
      %s424 = sphi 0, %s423
      %s440 = sphi 0, %s424
    $region4: #{tpu_custom_call.1} parent=1 // loop_header_branch
      %30 = sbr.rel (%p28) target = $region8
    $region5: #{tpu_custom_call.1} parent=1 // loop_body
      %s32 = ssub.s32 %s27, 1
      %s33 = ssub.s32 %s27, 2
      %s34 = sadd.s32 %s27, 1
      %s35 = ssub.s32 %s27, %s34
      %p36 = scmp.eq.s32.totalorder %s35, 0
      %s38 = sadd.s32 %s37, 1
      %s39 = scalar_select %p36, %s37, %s38
      %p42 = pneg %p36
      %p43 = scmp.eq.s32.totalorder %s27, 1
      %p44 = por %p42, %p43
      %p45 = scmp.ne.s32.totalorder %s37, %s40
      %p46 = scmp.eq.s32.totalorder %s27, 0
      %p47 = por %p45, %p46
      %p48 = scmp.ne.s32.totalorder %s37, %s40
      %p49 = scmp.eq.s32.totalorder %s32, 1
      %p50 = por %p48, %p49
      %p51 = scmp.ne.s32.totalorder %s40, %s41
      %p52 = scmp.eq.s32.totalorder %s32, 0
      %p53 = por %p51, %p52
      %p54 = scmp.ne.s32.totalorder %s40, %s41
      %p55 = scmp.eq.s32.totalorder %s33, 1
      %p56 = por %p54, %p55
      %p58 = scmp.ne.s32.totalorder %s41, %s57
      %p59 = scmp.eq.s32.totalorder %s33, 0
      %p60 = por %p58, %p59
      %s62 = sadd.s32 %s61, 1
      %p65 = scmp.eq.s32.totalorder %s27, 1
      %p66 = scmp.ne.s32.totalorder %s61, %s63
      %p67 = scmp.eq.s32.totalorder %s27, 0
      %p68 = por %p66, %p67
      %p69 = scmp.ne.s32.totalorder %s61, %s63
      %p70 = scmp.eq.s32.totalorder %s32, 1
      %p71 = por %p69, %p70
      %p72 = scmp.ne.s32.totalorder %s63, %s64
      %p73 = scmp.eq.s32.totalorder %s32, 0
      %p74 = por %p72, %p73
      %p75 = scmp.ne.s32.totalorder %s63, %s64
      %p76 = scmp.eq.s32.totalorder %s33, 1
      %p77 = por %p75, %p76
      %p79 = scmp.ne.s32.totalorder %s64, %s78
      %p80 = scmp.eq.s32.totalorder %s33, 0
      %p81 = por %p79, %p80
      %s83 = sadd.s32 %s82, 1
      %p86 = scmp.eq.s32.totalorder %s27, 1
      %p87 = scmp.ne.s32.totalorder %s82, %s84
      %p88 = scmp.eq.s32.totalorder %s27, 0
      %p89 = por %p87, %p88
      %p90 = scmp.ne.s32.totalorder %s82, %s84
      %p91 = scmp.eq.s32.totalorder %s32, 1
      %p92 = por %p90, %p91
      %p93 = scmp.ne.s32.totalorder %s84, %s85
      %p94 = scmp.eq.s32.totalorder %s32, 0
      %p95 = por %p93, %p94
      %p96 = scmp.ne.s32.totalorder %s84, %s85
      %p97 = scmp.eq.s32.totalorder %s33, 1
      %p98 = por %p96, %p97
      %p100 = scmp.ne.s32.totalorder %s85, %s99
      %p101 = scmp.eq.s32.totalorder %s33, 0
      %p102 = por %p100, %p101
      %s104 = sadd.s32 %s103, 1
      %p107 = scmp.eq.s32.totalorder %s27, 1
      %p108 = scmp.ne.s32.totalorder %s103, %s105
      %p109 = scmp.eq.s32.totalorder %s27, 0
      %p110 = por %p108, %p109
      %p111 = scmp.ne.s32.totalorder %s103, %s105
      %p112 = scmp.eq.s32.totalorder %s32, 1
      %p113 = por %p111, %p112
      %p114 = scmp.ne.s32.totalorder %s105, %s106
      %p115 = scmp.eq.s32.totalorder %s32, 0
      %p116 = por %p114, %p115
      %p117 = scmp.ne.s32.totalorder %s105, %s106
      %p118 = scmp.eq.s32.totalorder %s33, 1
      %p119 = por %p117, %p118
      %p121 = scmp.ne.s32.totalorder %s106, %s120
      %p122 = scmp.eq.s32.totalorder %s33, 0
      %p123 = por %p121, %p122
      %s125 = sadd.s32 %s124, 1
      %p128 = scmp.eq.s32.totalorder %s27, 1
      %p129 = scmp.ne.s32.totalorder %s124, %s126
      %p130 = scmp.eq.s32.totalorder %s27, 0
      %p131 = por %p129, %p130
      %p132 = scmp.ne.s32.totalorder %s124, %s126
      %p133 = scmp.eq.s32.totalorder %s32, 1
      %p134 = por %p132, %p133
      %p135 = scmp.ne.s32.totalorder %s126, %s127
      %p136 = scmp.eq.s32.totalorder %s32, 0
      %p137 = por %p135, %p136
      %p138 = scmp.ne.s32.totalorder %s126, %s127
      %p139 = scmp.eq.s32.totalorder %s33, 1
      %p140 = por %p138, %p139
      %p142 = scmp.ne.s32.totalorder %s127, %s141
      %p143 = scmp.eq.s32.totalorder %s33, 0
      %p144 = por %p142, %p143
      %s146 = sadd.s32 %s145, 1
      %p149 = scmp.eq.s32.totalorder %s27, 1
      %p150 = scmp.ne.s32.totalorder %s145, %s147
      %p151 = scmp.eq.s32.totalorder %s27, 0
      %p152 = por %p150, %p151
      %p153 = scmp.ne.s32.totalorder %s145, %s147
      %p154 = scmp.eq.s32.totalorder %s32, 1
      %p155 = por %p153, %p154
      %p156 = scmp.ne.s32.totalorder %s147, %s148
      %p157 = scmp.eq.s32.totalorder %s32, 0
      %p158 = por %p156, %p157
      %p159 = scmp.ne.s32.totalorder %s147, %s148
      %p160 = scmp.eq.s32.totalorder %s33, 1
      %p161 = por %p159, %p160
      %p163 = scmp.ne.s32.totalorder %s148, %s162
      %p164 = scmp.eq.s32.totalorder %s33, 0
      %p165 = por %p163, %p164
      %s167 = sadd.s32 %s166, 1
      %p170 = scmp.eq.s32.totalorder %s27, 1
      %p171 = scmp.ne.s32.totalorder %s166, %s168
      %p172 = scmp.eq.s32.totalorder %s27, 0
      %p173 = por %p171, %p172
      %p174 = scmp.ne.s32.totalorder %s166, %s168
      %p175 = scmp.eq.s32.totalorder %s32, 1
      %p176 = por %p174, %p175
      %p177 = scmp.ne.s32.totalorder %s168, %s169
      %p178 = scmp.eq.s32.totalorder %s32, 0
      %p179 = por %p177, %p178
      %p180 = scmp.ne.s32.totalorder %s168, %s169
      %p181 = scmp.eq.s32.totalorder %s33, 1
      %p182 = por %p180, %p181
      %p184 = scmp.ne.s32.totalorder %s169, %s183
      %p185 = scmp.eq.s32.totalorder %s33, 0
      %p186 = por %p184, %p185
      %s188 = sadd.s32 %s187, 1
      %p191 = scmp.eq.s32.totalorder %s27, 1
      %p192 = scmp.ne.s32.totalorder %s187, %s189
      %p193 = scmp.eq.s32.totalorder %s27, 0
      %p194 = por %p192, %p193
      %p195 = scmp.ne.s32.totalorder %s187, %s189
      %p196 = scmp.eq.s32.totalorder %s32, 1
      %p197 = por %p195, %p196
      %p198 = scmp.ne.s32.totalorder %s189, %s190
      %p199 = scmp.eq.s32.totalorder %s32, 0
      %p200 = por %p198, %p199
      %p201 = scmp.ne.s32.totalorder %s189, %s190
      %p202 = scmp.eq.s32.totalorder %s33, 1
      %p203 = por %p201, %p202
      %p205 = scmp.ne.s32.totalorder %s190, %s204
      %p206 = scmp.eq.s32.totalorder %s33, 0
      %p207 = por %p205, %p206
      %s209 = sadd.s32 %s208, 1
      %p212 = scmp.eq.s32.totalorder %s27, 1
      %p213 = scmp.ne.s32.totalorder %s208, %s210
      %p214 = scmp.eq.s32.totalorder %s27, 0
      %p215 = por %p213, %p214
      %p216 = scmp.ne.s32.totalorder %s208, %s210
      %p217 = scmp.eq.s32.totalorder %s32, 1
      %p218 = por %p216, %p217
      %p219 = scmp.ne.s32.totalorder %s210, %s211
      %p220 = scmp.eq.s32.totalorder %s32, 0
      %p221 = por %p219, %p220
      %p222 = scmp.ne.s32.totalorder %s210, %s211
      %p223 = scmp.eq.s32.totalorder %s33, 1
      %p224 = por %p222, %p223
      %p226 = scmp.ne.s32.totalorder %s211, %s225
      %p227 = scmp.eq.s32.totalorder %s33, 0
      %p228 = por %p226, %p227
      %s230 = sadd.s32 %s229, 1
      %p233 = scmp.eq.s32.totalorder %s27, 1
      %p234 = scmp.ne.s32.totalorder %s229, %s231
      %p235 = scmp.eq.s32.totalorder %s27, 0
      %p236 = por %p234, %p235
      %p237 = scmp.ne.s32.totalorder %s229, %s231
      %p238 = scmp.eq.s32.totalorder %s32, 1
      %p239 = por %p237, %p238
      %p240 = scmp.ne.s32.totalorder %s231, %s232
      %p241 = scmp.eq.s32.totalorder %s32, 0
      %p242 = por %p240, %p241
      %p243 = scmp.ne.s32.totalorder %s231, %s232
      %p244 = scmp.eq.s32.totalorder %s33, 1
      %p245 = por %p243, %p244
      %p247 = scmp.ne.s32.totalorder %s232, %s246
      %p248 = scmp.eq.s32.totalorder %s33, 0
      %p249 = por %p247, %p248
      %s251 = sadd.s32 %s250, 1
      %p254 = scmp.eq.s32.totalorder %s27, 1
      %p255 = scmp.ne.s32.totalorder %s250, %s252
      %p256 = scmp.eq.s32.totalorder %s27, 0
      %p257 = por %p255, %p256
      %p258 = scmp.ne.s32.totalorder %s250, %s252
      %p259 = scmp.eq.s32.totalorder %s32, 1
      %p260 = por %p258, %p259
      %p261 = scmp.ne.s32.totalorder %s252, %s253
      %p262 = scmp.eq.s32.totalorder %s32, 0
      %p263 = por %p261, %p262
      %p264 = scmp.ne.s32.totalorder %s252, %s253
      %p265 = scmp.eq.s32.totalorder %s33, 1
      %p266 = por %p264, %p265
      %p268 = scmp.ne.s32.totalorder %s253, %s267
      %p269 = scmp.eq.s32.totalorder %s33, 0
      %p270 = por %p268, %p269
      %s272 = sadd.s32 %s271, 1
      %p275 = scmp.eq.s32.totalorder %s27, 1
      %p276 = scmp.ne.s32.totalorder %s271, %s273
      %p277 = scmp.eq.s32.totalorder %s27, 0
      %p278 = por %p276, %p277
      %p279 = scmp.ne.s32.totalorder %s271, %s273
      %p280 = scmp.eq.s32.totalorder %s32, 1
      %p281 = por %p279, %p280
      %p282 = scmp.ne.s32.totalorder %s273, %s274
      %p283 = scmp.eq.s32.totalorder %s32, 0
      %p284 = por %p282, %p283
      %p285 = scmp.ne.s32.totalorder %s273, %s274
      %p286 = scmp.eq.s32.totalorder %s33, 1
      %p287 = por %p285, %p286
      %p289 = scmp.ne.s32.totalorder %s274, %s288
      %p290 = scmp.eq.s32.totalorder %s33, 0
      %p291 = por %p289, %p290
      %s293 = sadd.s32 %s292, 1
      %p296 = scmp.eq.s32.totalorder %s27, 1
      %p297 = scmp.ne.s32.totalorder %s292, %s294
      %p298 = scmp.eq.s32.totalorder %s27, 0
      %p299 = por %p297, %p298
      %p300 = scmp.ne.s32.totalorder %s292, %s294
      %p301 = scmp.eq.s32.totalorder %s32, 1
      %p302 = por %p300, %p301
      %p303 = scmp.ne.s32.totalorder %s294, %s295
      %p304 = scmp.eq.s32.totalorder %s32, 0
      %p305 = por %p303, %p304
      %p306 = scmp.ne.s32.totalorder %s294, %s295
      %p307 = scmp.eq.s32.totalorder %s33, 1
      %p308 = por %p306, %p307
      %p310 = scmp.ne.s32.totalorder %s295, %s309
      %p311 = scmp.eq.s32.totalorder %s33, 0
      %p312 = por %p310, %p311
      %s314 = sadd.s32 %s313, 1
      %p317 = scmp.eq.s32.totalorder %s27, 1
      %p318 = scmp.ne.s32.totalorder %s313, %s315
      %p319 = scmp.eq.s32.totalorder %s27, 0
      %p320 = por %p318, %p319
      %p321 = scmp.ne.s32.totalorder %s313, %s315
      %p322 = scmp.eq.s32.totalorder %s32, 1
      %p323 = por %p321, %p322
      %p324 = scmp.ne.s32.totalorder %s315, %s316
      %p325 = scmp.eq.s32.totalorder %s32, 0
      %p326 = por %p324, %p325
      %p327 = scmp.ne.s32.totalorder %s315, %s316
      %p328 = scmp.eq.s32.totalorder %s33, 1
      %p329 = por %p327, %p328
      %p331 = scmp.ne.s32.totalorder %s316, %s330
      %p332 = scmp.eq.s32.totalorder %s33, 0
      %p333 = por %p331, %p332
      %s335 = sadd.s32 %s334, 1
      %p338 = scmp.eq.s32.totalorder %s27, 1
      %p339 = scmp.ne.s32.totalorder %s334, %s336
      %p340 = scmp.eq.s32.totalorder %s27, 0
      %p341 = por %p339, %p340
      %p342 = scmp.ne.s32.totalorder %s334, %s336
      %p343 = scmp.eq.s32.totalorder %s32, 1
      %p344 = por %p342, %p343
      %p345 = scmp.ne.s32.totalorder %s336, %s337
      %p346 = scmp.eq.s32.totalorder %s32, 0
      %p347 = por %p345, %p346
      %p348 = scmp.ne.s32.totalorder %s336, %s337
      %p349 = scmp.eq.s32.totalorder %s33, 1
      %p350 = por %p348, %p349
      %p352 = scmp.ne.s32.totalorder %s337, %s351
      %p353 = scmp.eq.s32.totalorder %s33, 0
      %p354 = por %p352, %p353
      %s356 = sadd.s32 %s355, 1
      %p359 = scmp.eq.s32.totalorder %s27, 1
      %p360 = scmp.ne.s32.totalorder %s355, %s357
      %p361 = scmp.eq.s32.totalorder %s27, 0
      %p362 = por %p360, %p361
      %p363 = scmp.ne.s32.totalorder %s355, %s357
      %p364 = scmp.eq.s32.totalorder %s32, 1
      %p365 = por %p363, %p364
      %p366 = scmp.ne.s32.totalorder %s357, %s358
      %p367 = scmp.eq.s32.totalorder %s32, 0
      %p368 = por %p366, %p367
      %p369 = scmp.ne.s32.totalorder %s357, %s358
      %p370 = scmp.eq.s32.totalorder %s33, 1
      %p371 = por %p369, %p370
      %p373 = scmp.ne.s32.totalorder %s358, %s372
      %p374 = scmp.eq.s32.totalorder %s33, 0
      %p375 = por %p373, %p374
      %s377 = sadd.s32 %s376, 1
      %p380 = scmp.eq.s32.totalorder %s27, 1
      %p381 = scmp.ne.s32.totalorder %s376, %s378
      %p382 = scmp.eq.s32.totalorder %s27, 0
      %p383 = por %p381, %p382
      %p384 = scmp.ne.s32.totalorder %s376, %s378
      %p385 = scmp.eq.s32.totalorder %s32, 1
      %p386 = por %p384, %p385
      %p387 = scmp.ne.s32.totalorder %s378, %s379
      %p388 = scmp.eq.s32.totalorder %s32, 0
      %p389 = por %p387, %p388
      %p390 = scmp.ne.s32.totalorder %s378, %s379
      %p391 = scmp.eq.s32.totalorder %s33, 1
      %p392 = por %p390, %p391
      %p394 = scmp.ne.s32.totalorder %s379, %s393
      %p395 = scmp.eq.s32.totalorder %s33, 0
      %p396 = por %p394, %p395
      %s398 = sadd.s32 %s397, 1
      %p401 = scmp.eq.s32.totalorder %s27, 1
      %p402 = scmp.ne.s32.totalorder %s397, %s399
      %p403 = scmp.eq.s32.totalorder %s27, 0
      %p404 = por %p402, %p403
      %p405 = scmp.ne.s32.totalorder %s397, %s399
      %p406 = scmp.eq.s32.totalorder %s32, 1
      %p407 = por %p405, %p406
      %p408 = scmp.ne.s32.totalorder %s399, %s400
      %p409 = scmp.eq.s32.totalorder %s32, 0
      %p410 = por %p408, %p409
      %p411 = scmp.ne.s32.totalorder %s399, %s400
      %p412 = scmp.eq.s32.totalorder %s33, 1
      %p413 = por %p411, %p412
      %p415 = scmp.ne.s32.totalorder %s400, %s414
      %p416 = scmp.eq.s32.totalorder %s33, 0
      %p417 = por %p415, %p416
      %s418 = ssub.s32 %s27, %s34
      %p419 = scmp.eq.s32.totalorder %s418, 0
      %s421 = sadd.s32 %s420, 1
      %s422 = scalar_select %p419, %s420, %s421
      %p425 = pneg %p419
      %p426 = scmp.eq.s32.totalorder %s27, 1
      %p427 = por %p425, %p426
      %p428 = scmp.ne.s32.totalorder %s420, %s423
      %p429 = scmp.eq.s32.totalorder %s27, 0
      %p430 = por %p428, %p429
      %p431 = scmp.ne.s32.totalorder %s420, %s423
      %p432 = scmp.eq.s32.totalorder %s32, 1
      %p433 = por %p431, %p432
      %p434 = scmp.ne.s32.totalorder %s423, %s424
      %p435 = scmp.eq.s32.totalorder %s32, 0
      %p436 = por %p434, %p435
      %p437 = scmp.ne.s32.totalorder %s423, %s424
      %p438 = scmp.eq.s32.totalorder %s33, 1
      %p439 = por %p437, %p438
      %p441 = scmp.ne.s32.totalorder %s424, %s440
      %p442 = scmp.eq.s32.totalorder %s33, 0
      %p443 = por %p441, %p442
      %p444 = scmp.le.s32.totalorder 1, %s27
      %p445 = scmp.lt.s32.totalorder %s27, 3
      %p446 = pnand %p444, %p445
      %p447 = pneg %p446
      // Predicated region
      $region9: #{tpu_custom_call.1} parent=5 // pred_check
        _
      $region10: #{tpu_custom_call.1} parent=5 // pred_check_branch
        %449 = sbr.rel (%p446) target = $region12
      $region11: #{tpu_custom_call.1} parent=5 // pred_region
        %s450 = ssub.s32 %s27, 1
        // Predicated region
        $region13: #{tpu_custom_call.1} parent=11 // pred_check
          %p451 = pneg %p74
        $region14: #{tpu_custom_call.1} parent=11 // pred_check_branch
          %453 = sbr.rel (%p451) target = $region16
        $region15: #{tpu_custom_call.1} parent=11 // pred_region
          _
        $region16: #{tpu_custom_call.1} parent=11 // pred_fallthru
          _
        // Predicated region
        $region17: #{tpu_custom_call.1} parent=11 // pred_check
          %p454 = pneg %p95
        $region18: #{tpu_custom_call.1} parent=11 // pred_check_branch
          %456 = sbr.rel (%p454) target = $region20
        $region19: #{tpu_custom_call.1} parent=11 // pred_region
          _
        $region20: #{tpu_custom_call.1} parent=11 // pred_fallthru
          _
        // Predicated region
        $region21: #{tpu_custom_call.1} parent=11 // pred_check
          %p457 = pneg %p116
        $region22: #{tpu_custom_call.1} parent=11 // pred_check_branch
          %459 = sbr.rel (%p457) target = $region24
        $region23: #{tpu_custom_call.1} parent=11 // pred_region
          _
        $region24: #{tpu_custom_call.1} parent=11 // pred_fallthru
          _
        // Predicated region
        $region25: #{tpu_custom_call.1} parent=11 // pred_check
          %p460 = pneg %p137
        $region26: #{tpu_custom_call.1} parent=11 // pred_check_branch
          %462 = sbr.rel (%p460) target = $region28
        $region27: #{tpu_custom_call.1} parent=11 // pred_region
          _
        $region28: #{tpu_custom_call.1} parent=11 // pred_fallthru
          _
        // Predicated region
        $region29: #{tpu_custom_call.1} parent=11 // pred_check
          %p463 = pneg %p158
        $region30: #{tpu_custom_call.1} parent=11 // pred_check_branch
          %465 = sbr.rel (%p463) target = $region32
        $region31: #{tpu_custom_call.1} parent=11 // pred_region
          _
        $region32: #{tpu_custom_call.1} parent=11 // pred_fallthru
          _
        // Predicated region
        $region33: #{tpu_custom_call.1} parent=11 // pred_check
          %p466 = pneg %p179
        $region34: #{tpu_custom_call.1} parent=11 // pred_check_branch
          %468 = sbr.rel (%p466) target = $region36
        $region35: #{tpu_custom_call.1} parent=11 // pred_region
          _
        $region36: #{tpu_custom_call.1} parent=11 // pred_fallthru
          _
        // Predicated region
        $region37: #{tpu_custom_call.1} parent=11 // pred_check
          %p469 = pneg %p200
        $region38: #{tpu_custom_call.1} parent=11 // pred_check_branch
          %471 = sbr.rel (%p469) target = $region40
        $region39: #{tpu_custom_call.1} parent=11 // pred_region
          _
        $region40: #{tpu_custom_call.1} parent=11 // pred_fallthru
          _
        // Predicated region
        $region41: #{tpu_custom_call.1} parent=11 // pred_check
          %p472 = pneg %p221
        $region42: #{tpu_custom_call.1} parent=11 // pred_check_branch
          %474 = sbr.rel (%p472) target = $region44
        $region43: #{tpu_custom_call.1} parent=11 // pred_region
          _
        $region44: #{tpu_custom_call.1} parent=11 // pred_fallthru
          _
        // Predicated region
        $region45: #{tpu_custom_call.1} parent=11 // pred_check
          %p475 = pneg %p242
        $region46: #{tpu_custom_call.1} parent=11 // pred_check_branch
          %477 = sbr.rel (%p475) target = $region48
        $region47: #{tpu_custom_call.1} parent=11 // pred_region
          _
        $region48: #{tpu_custom_call.1} parent=11 // pred_fallthru
          _
        // Predicated region
        $region49: #{tpu_custom_call.1} parent=11 // pred_check
          %p478 = pneg %p263
        $region50: #{tpu_custom_call.1} parent=11 // pred_check_branch
          %480 = sbr.rel (%p478) target = $region52
        $region51: #{tpu_custom_call.1} parent=11 // pred_region
          _
        $region52: #{tpu_custom_call.1} parent=11 // pred_fallthru
          _
        // Predicated region
        $region53: #{tpu_custom_call.1} parent=11 // pred_check
          %p481 = pneg %p284
        $region54: #{tpu_custom_call.1} parent=11 // pred_check_branch
          %483 = sbr.rel (%p481) target = $region56
        $region55: #{tpu_custom_call.1} parent=11 // pred_region
          _
        $region56: #{tpu_custom_call.1} parent=11 // pred_fallthru
          _
        // Predicated region
        $region57: #{tpu_custom_call.1} parent=11 // pred_check
          %p484 = pneg %p305
        $region58: #{tpu_custom_call.1} parent=11 // pred_check_branch
          %486 = sbr.rel (%p484) target = $region60
        $region59: #{tpu_custom_call.1} parent=11 // pred_region
          _
        $region60: #{tpu_custom_call.1} parent=11 // pred_fallthru
          _
        // Predicated region
        $region61: #{tpu_custom_call.1} parent=11 // pred_check
          %p487 = pneg %p326
        $region62: #{tpu_custom_call.1} parent=11 // pred_check_branch
          %489 = sbr.rel (%p487) target = $region64
        $region63: #{tpu_custom_call.1} parent=11 // pred_region
          _
        $region64: #{tpu_custom_call.1} parent=11 // pred_fallthru
          _
        // Predicated region
        $region65: #{tpu_custom_call.1} parent=11 // pred_check
          %p490 = pneg %p347
        $region66: #{tpu_custom_call.1} parent=11 // pred_check_branch
          %492 = sbr.rel (%p490) target = $region68
        $region67: #{tpu_custom_call.1} parent=11 // pred_region
          _
        $region68: #{tpu_custom_call.1} parent=11 // pred_fallthru
          _
        // Predicated region
        $region69: #{tpu_custom_call.1} parent=11 // pred_check
          %p493 = pneg %p368
        $region70: #{tpu_custom_call.1} parent=11 // pred_check_branch
          %495 = sbr.rel (%p493) target = $region72
        $region71: #{tpu_custom_call.1} parent=11 // pred_region
          _
        $region72: #{tpu_custom_call.1} parent=11 // pred_fallthru
          _
        // Predicated region
        $region73: #{tpu_custom_call.1} parent=11 // pred_check
          %p496 = pneg %p389
        $region74: #{tpu_custom_call.1} parent=11 // pred_check_branch
          %498 = sbr.rel (%p496) target = $region76
        $region75: #{tpu_custom_call.1} parent=11 // pred_region
          _
        $region76: #{tpu_custom_call.1} parent=11 // pred_fallthru
          _
        // Predicated region
        $region77: #{tpu_custom_call.1} parent=11 // pred_check
          %p499 = pneg %p410
        $region78: #{tpu_custom_call.1} parent=11 // pred_check_branch
          %501 = sbr.rel (%p499) target = $region80
        $region79: #{tpu_custom_call.1} parent=11 // pred_region
          _
        $region80: #{tpu_custom_call.1} parent=11 // pred_fallthru
          _
      $region12: #{tpu_custom_call.1} parent=5 // pred_fallthru
        _
      %p502 = scmp.lt.s32.totalorder %s27, 2
      // Predicated region
      $region81: #{tpu_custom_call.1} parent=5 // pred_check
        %p503 = pneg %p502
      $region82: #{tpu_custom_call.1} parent=5 // pred_check_branch
        %505 = sbr.rel (%p503) target = $region84
      $region83: #{tpu_custom_call.1} parent=5 // pred_region
        // Predicated region
        $region85: #{tpu_custom_call.1} parent=83 // pred_check
          %p506 = pneg %p47
        $region86: #{tpu_custom_call.1} parent=83 // pred_check_branch
          %508 = sbr.rel (%p506) target = $region88
        $region87: #{tpu_custom_call.1} parent=83 // pred_region
          %p509 = scmp.lt.s32.totalorder %s27, 1
          %s510 = scalar_select %p509, %s27, 1
          %s511 = smul.addr %s510, 8
          %s512 = scalar_lea.vmem %s0, %s511
        $region88: #{tpu_custom_call.1} parent=83 // pred_fallthru
          _
      $region84: #{tpu_custom_call.1} parent=5 // pred_fallthru
        _
      %p513 = scmp.le.s32.totalorder 1, %s27
      %p514 = scmp.lt.s32.totalorder %s27, 3
      %p515 = pnand %p513, %p514
      %p516 = pneg %p515
      // Predicated region
      $region89: #{tpu_custom_call.1} parent=5 // pred_check
        _
      $region90: #{tpu_custom_call.1} parent=5 // pred_check_branch
        %518 = sbr.rel (%p515) target = $region92
      $region91: #{tpu_custom_call.1} parent=5 // pred_region
        %s519 = ssub.s32 %s27, 1
        %p520 = scmp.lt.s32.totalorder %s32, 1
        %s521 = scalar_select %p520, %s32, 1
        %s522 = smul.addr %s521, 8
        %s523 = scalar_lea.vmem %s0, %s522
        %p524 = pneg %p53
        %p525 = pneg %p50
        %p526 = pneg %p74
        %p527 = pneg %p71
        %p528 = pneg %p95
        %p529 = pneg %p92
        %p530 = pneg %p116
        %p531 = pneg %p113
        %p532 = pneg %p137
        %p533 = pneg %p134
        %p534 = pneg %p158
        %p535 = pneg %p155
        %p536 = pneg %p179
        %p537 = pneg %p176
        %p538 = pneg %p200
        %p539 = pneg %p197
        %p540 = pneg %p221
        %p541 = pneg %p218
        %p542 = pneg %p242
        %p543 = pneg %p239
        %p544 = pneg %p263
        %p545 = pneg %p260
        %p546 = pneg %p284
        %p547 = pneg %p281
        %p548 = pneg %p305
        %p549 = pneg %p302
        %p550 = pneg %p326
        %p551 = pneg %p323
        %p552 = pneg %p347
        %p553 = pneg %p344
        %p554 = pneg %p368
        %p555 = pneg %p365
        %p556 = pneg %p389
        %p557 = pneg %p386
        %p558 = pneg %p410
        %p559 = pneg %p407
        %p560 = pneg %p436
        %p561 = pneg %p433
        %s562 = sand.u32 %s423, 1
        %s563 = scalar_lea.sflag [#allocation3], %s562
        %s564 = sand.u32 %s423, 1
        %s565 = smul.addr %s564, 8
        %s566 = scalar_lea.vmem [#allocation2], %s565
        %p567 = scmp.lt.s32.totalorder %s32, 1
        %s568 = scalar_select %p567, %s32, 1
        %s569 = smul.addr %s568, 8
        %s570 = scalar_lea.vmem %s0, %s569
        %v571 = vld [vmem:[%s570] sm:$0xff]
        %v572 = vld [vmem:[%s1] sm:$0xff]
        %v573 = vadd.f32 %v571, %v572
        %v574 = vld [vmem:[%s2] sm:$0xff]
        %v575 = vld [vmem:[%s2 + $0x8] sm:$0xff]
        %v576 = vld [vmem:[%s2 + $0x10] sm:$0xff]
        %v577 = vld [vmem:[%s2 + $0x18] sm:$0xff]
        %v578 = vld [vmem:[%s3] sm:$0x1]
        %v580 = vperm.slane %v578, 0
        %vm582 = vcmask 261120
        %v584 = vsel %vm582, %v573, 0
        %586 = vmatpush.msra.mxu0 0.0
        %587 = vmatpush.msra.mxu0 0.0
        %588 = vmatpush.msra.mxu0 0.0
        %589 = vmatpush.msra.mxu0 0.0
        %590 = vmatpush.msra.mxu0 0.0
        %591 = vmatpush.msra.mxu0 0.0
        %592 = vmatpush.msra.mxu0 0.0
        %593 = vmatpush.msra.mxu0 0.0
        %594 = vmatpush.msra.mxu0 0.0
        %595 = vmatpush.msra.mxu0 0.0
        %596 = vmatpush.msra.mxu0 0.0
        %597 = vmatpush.msra.mxu0 0.0
        %598 = vmatpush.msra.mxu0 %v577
        %599 = vmatpush.msra.mxu0 %v576
        %600 = vmatpush.msra.mxu0 %v575
        %601 = vmatpush.msra.mxu0 %v574
        %602 = vmatmul.f32.gmra.mxu0 %v584
        %v603 = vpop.f32.mrf.mxu0
        %v604 = vadd.f32 %v580, %v603
        %605 = vdwg.mxu0
        %v606 = vld [vmem:[%s4] sm:$0xff]
        %v607 = vld [vmem:[%s4 + $0x8] sm:$0xff]
        %v608 = vld [vmem:[%s4 + $0x10] sm:$0xff]
        %v609 = vld [vmem:[%s4 + $0x18] sm:$0xff]
        %v610 = vld [vmem:[%s5] sm:$0x1]
        %v612 = vperm.slane %v610, 0
        %614 = vmatpush.msra.mxu0 0.0
        %615 = vmatpush.msra.mxu0 0.0
        %616 = vmatpush.msra.mxu0 0.0
        %617 = vmatpush.msra.mxu0 0.0
        %618 = vmatpush.msra.mxu0 0.0
        %619 = vmatpush.msra.mxu0 0.0
        %620 = vmatpush.msra.mxu0 0.0
        %621 = vmatpush.msra.mxu0 0.0
        %622 = vmatpush.msra.mxu0 0.0
        %623 = vmatpush.msra.mxu0 0.0
        %624 = vmatpush.msra.mxu0 0.0
        %625 = vmatpush.msra.mxu0 0.0
        %626 = vmatpush.msra.mxu0 %v609
        %627 = vmatpush.msra.mxu0 %v608
        %628 = vmatpush.msra.mxu0 %v607
        %629 = vmatpush.msra.mxu0 %v606
        %630 = vmatmul.f32.gmra.mxu0 %v584
        %v631 = vpop.f32.mrf.mxu0
        %v632 = vadd.f32 %v612, %v631
        %633 = vdwg.mxu0
        %v634 = vld [vmem:[%s6] sm:$0xff]
        %v635 = vld [vmem:[%s6 + $0x8] sm:$0xff]
        %v636 = vld [vmem:[%s6 + $0x10] sm:$0xff]
        %v637 = vld [vmem:[%s6 + $0x18] sm:$0xff]
        %v638 = vld [vmem:[%s7] sm:$0x1]
        %v640 = vperm.slane %v638, 0
        %642 = vmatpush.msra.mxu0 0.0
        %643 = vmatpush.msra.mxu0 0.0
        %644 = vmatpush.msra.mxu0 0.0
        %645 = vmatpush.msra.mxu0 0.0
        %646 = vmatpush.msra.mxu0 0.0
        %647 = vmatpush.msra.mxu0 0.0
        %648 = vmatpush.msra.mxu0 0.0
        %649 = vmatpush.msra.mxu0 0.0
        %650 = vmatpush.msra.mxu0 0.0
        %651 = vmatpush.msra.mxu0 0.0
        %652 = vmatpush.msra.mxu0 0.0
        %653 = vmatpush.msra.mxu0 0.0
        %654 = vmatpush.msra.mxu0 %v637
        %655 = vmatpush.msra.mxu0 %v636
        %656 = vmatpush.msra.mxu0 %v635
        %657 = vmatpush.msra.mxu0 %v634
        %658 = vmatmul.f32.gmra.mxu0 %v584
        %v659 = vpop.f32.mrf.mxu0
        %v660 = vadd.f32 %v640, %v659
        %661 = vdwg.mxu0
        %v663 = vsel %vm582, %v604, 0
        %v666 = vsel %vm582, %v632, 0
        %668 = vmatpush.xpose.msra.mxu0 0.0
        %669 = vmatpush.xpose.msra.mxu0 0.0
        %670 = vmatpush.xpose.msra.mxu0 0.0
        %671 = vmatpush.xpose.msra.mxu0 0.0
        %672 = vmatpush.xpose.msra.mxu0 0.0
        %673 = vmatpush.xpose.msra.mxu0 0.0
        %674 = vmatpush.xpose.msra.mxu0 0.0
        %675 = vmatpush.xpose.msra.mxu0 0.0
        %676 = vmatpush.xpose.msra.mxu0 0.0
        %677 = vmatpush.xpose.msra.mxu0 0.0
        %678 = vmatpush.xpose.msra.mxu0 0.0
        %679 = vmatpush.xpose.msra.mxu0 0.0
        %680 = vmatpush.xpose.msra.mxu0 0.0
        %681 = vmatpush.xpose.msra.mxu0 0.0
        %682 = vmatpush.xpose.msra.mxu0 0.0
        %683 = vmatpush.xpose.msra.mxu0 %v666
        %684 = vmatmul.f32.gmra.mxu0 %v663
        %v685 = vpop.f32.mrf.mxu0
        %v686 = vadd.f32 0.0, %v685
        %687 = vdwg.mxu0
        %v688 = vmul.f32 %v686, 0.17677669
        %vm689 = vcmask 64512
        %v690 = vsel %vm689, %v688, -inf
        %691 = vmax.xlane.f32.xlu0 %v690
        %v692 = vpop.xlane.xlu0 %691
        %v693 = vsub.f32 %v688, %v692
        %v694 = vmul.f32 %v693, 1.442695
        %v695 = vpow.pop %v694
        %v696 = vsel %vm689, %v695, 0.0
        %697 = vadd.xlane.f32.xlu0 %v696
        %v698 = vpop.xlane.xlu0 %697
        %v699 = vrcp.pop %v698
        %v700 = vmul.f32 %v695, %v699
        %v702 = vsel %vm689, %v700, 0
        %704 = vmatpush.msra.mxu0 0.0
        %705 = vmatpush.msra.mxu0 0.0
        %706 = vmatpush.msra.mxu0 0.0
        %707 = vmatpush.msra.mxu0 0.0
        %708 = vmatpush.msra.mxu0 0.0
        %709 = vmatpush.msra.mxu0 0.0
        %710 = vmatpush.msra.mxu0 0.0
        %711 = vmatpush.msra.mxu0 0.0
        %712 = vmatpush.msra.mxu0 0.0
        %713 = vmatpush.msra.mxu0 0.0
        %714 = vmatpush.msra.mxu0 0.0
        %715 = vmatpush.msra.mxu0 0.0
        %716 = vmatpush.msra.mxu0 0.0
        %717 = vmatpush.msra.mxu0 0.0
        %718 = vmatpush.msra.mxu0 0.0
        %719 = vmatpush.msra.mxu0 %v660
        %720 = vmatmul.f32.gmra.mxu0 %v702
        %v721 = vpop.f32.mrf.mxu0
        %v722 = vadd.f32 0.0, %v721
        %723 = vdwg.mxu0
        %v724 = vld [vmem:[%s8] sm:$0xff]
        %v725 = vld [vmem:[%s8 + $0x8] sm:$0xff]
        %v726 = vld [vmem:[%s8 + $0x10] sm:$0xff]
        %v727 = vld [vmem:[%s8 + $0x18] sm:$0xff]
        %v728 = vld [vmem:[%s9] sm:$0x1]
        %v730 = vperm.slane %v728, 0
        %v733 = vsel %vm582, %v722, 0
        %735 = vmatpush.msra.mxu0 0.0
        %736 = vmatpush.msra.mxu0 0.0
        %737 = vmatpush.msra.mxu0 0.0
        %738 = vmatpush.msra.mxu0 0.0
        %739 = vmatpush.msra.mxu0 0.0
        %740 = vmatpush.msra.mxu0 0.0
        %741 = vmatpush.msra.mxu0 0.0
        %742 = vmatpush.msra.mxu0 0.0
        %743 = vmatpush.msra.mxu0 0.0
        %744 = vmatpush.msra.mxu0 0.0
        %745 = vmatpush.msra.mxu0 0.0
        %746 = vmatpush.msra.mxu0 0.0
        %747 = vmatpush.msra.mxu0 %v727
        %748 = vmatpush.msra.mxu0 %v726
        %749 = vmatpush.msra.mxu0 %v725
        %750 = vmatpush.msra.mxu0 %v724
        %751 = vmatmul.f32.gmra.mxu0 %v733
        %v752 = vpop.f32.mrf.mxu0
        %v753 = vadd.f32 %v730, %v752
        %754 = vdwg.mxu0
        %v755 = vadd.f32 %v573, %v753
        %v756 = vld [vmem:[%s10] sm:$0x1]
        %v757 = vld [vmem:[%s11] sm:$0x1]
        %v758 = vsel %vm582, %v755, 0.0
        %759 = vadd.xlane.f32.xlu0 %v758
        %v760 = vpop.xlane.xlu0 %759
        %v761 = vrcp.pop 32.0
        %v762 = vmul.f32 32.0, %v761
        %v763 = vsub.f32 1.0, %v762
        %v764 = vmul.f32 %v761, %v763
        %v765 = vadd.f32 %v761, %v764
        %vm766 = vweird.f32 %v761
        %v767 = vsel %vm766, %v761, %v765
        %v768 = vmul.f32 %v760, %v767
        %v769 = vsub.f32 %v755, %v768
        %v770 = vmul.f32 %v769, %v769
        %v771 = vsel %vm582, %v770, 0.0
        %772 = vadd.xlane.f32.xlu0 %v771
        %v773 = vpop.xlane.xlu0 %772
        %v774 = vmul.f32 %v773, %v767
        %v775 = vadd.f32 %v774, 1e-05
        %v776 = vrsqrt.pop %v775
        %v777 = vmul.f32 %v776, %v775
        %v778 = vmul.f32 %v777, %v776
        %v779 = vmul.f32 0.5, %v778
        %v780 = vsub.f32 1.5, %v779
        %v781 = vmul.f32 %v776, %v780
        %vm782 = vweird.f32 %v775
        %vm783 = vweird.f32 %v776
        %vm784 = vmor %vm782, %vm783
        %v785 = vsel %vm784, %v776, %v781
        %v786 = vmul.f32 %v769, %v785
        %v788 = vperm.slane %v756, 0
        %v790 = vmul.f32 %v786, %v788
        %v792 = vperm.slane %v757, 0
        %v794 = vadd.f32 %v790, %v792
        %v795 = vld [vmem:[%s12] sm:$0xff]
        %v796 = vld [vmem:[%s12 + $0x8] sm:$0xff]
        %v797 = vld [vmem:[%s12 + $0x10] sm:$0xff]
        %v798 = vld [vmem:[%s12 + $0x18] sm:$0xff]
        %v799 = vld [vmem:[%s12 + $0x20] sm:$0xff]
        %v800 = vld [vmem:[%s12 + $0x28] sm:$0xff]
        %v801 = vld [vmem:[%s12 + $0x30] sm:$0xff]
        %v802 = vld [vmem:[%s12 + $0x38] sm:$0xff]
        %v803 = vld [vmem:[%s12 + $0x40] sm:$0xff]
        %v804 = vld [vmem:[%s12 + $0x48] sm:$0xff]
        %v805 = vld [vmem:[%s12 + $0x50] sm:$0xff]
        %v806 = vld [vmem:[%s12 + $0x58] sm:$0xff]
        %v807 = vld [vmem:[%s12 + $0x60] sm:$0xff]
        %v808 = vld [vmem:[%s12 + $0x68] sm:$0xff]
        %v809 = vld [vmem:[%s12 + $0x70] sm:$0xff]
        %v810 = vld [vmem:[%s12 + $0x78] sm:$0xff]
        %v811 = vld [vmem:[%s12 + $0x80] sm:$0xff]
        %v812 = vld [vmem:[%s12 + $0x88] sm:$0xff]
        %v813 = vld [vmem:[%s12 + $0x90] sm:$0xff]
        %v814 = vld [vmem:[%s12 + $0x98] sm:$0xff]
        %v815 = vld [vmem:[%s12 + $0xa0] sm:$0xff]
        %v816 = vld [vmem:[%s12 + $0xa8] sm:$0xff]
        %v817 = vld [vmem:[%s12 + $0xb0] sm:$0xff]
        %v818 = vld [vmem:[%s12 + $0xb8] sm:$0xff]
        %v819 = vld [vmem:[%s12 + $0xc0] sm:$0xff]
        %v820 = vld [vmem:[%s12 + $0xc8] sm:$0xff]
        %v821 = vld [vmem:[%s12 + $0xd0] sm:$0xff]
        %v822 = vld [vmem:[%s12 + $0xd8] sm:$0xff]
        %v823 = vld [vmem:[%s12 + $0xe0] sm:$0xff]
        %v824 = vld [vmem:[%s12 + $0xe8] sm:$0xff]
        %v825 = vld [vmem:[%s12 + $0xf0] sm:$0xff]
        %v826 = vld [vmem:[%s12 + $0xf8] sm:$0xff]
        %v827 = vld [vmem:[%s12 + $0x100] sm:$0xff]
        %v828 = vld [vmem:[%s12 + $0x108] sm:$0xff]
        %v829 = vld [vmem:[%s12 + $0x110] sm:$0xff]
        %v830 = vld [vmem:[%s12 + $0x118] sm:$0xff]
        %v831 = vld [vmem:[%s12 + $0x120] sm:$0xff]
        %v832 = vld [vmem:[%s12 + $0x128] sm:$0xff]
        %v833 = vld [vmem:[%s12 + $0x130] sm:$0xff]
        %v834 = vld [vmem:[%s12 + $0x138] sm:$0xff]
        %v835 = vld [vmem:[%s12 + $0x140] sm:$0xff]
        %v836 = vld [vmem:[%s12 + $0x148] sm:$0xff]
        %v837 = vld [vmem:[%s12 + $0x150] sm:$0xff]
        %v838 = vld [vmem:[%s12 + $0x158] sm:$0xff]
        %v839 = vld [vmem:[%s12 + $0x160] sm:$0xff]
        %v840 = vld [vmem:[%s12 + $0x168] sm:$0xff]
        %v841 = vld [vmem:[%s12 + $0x170] sm:$0xff]
        %v842 = vld [vmem:[%s12 + $0x178] sm:$0xff]
        %v843 = vld [vmem:[%s12 + $0x180] sm:$0xff]
        %v844 = vld [vmem:[%s12 + $0x188] sm:$0xff]
        %v845 = vld [vmem:[%s12 + $0x190] sm:$0xff]
        %v846 = vld [vmem:[%s12 + $0x198] sm:$0xff]
        %v847 = vld [vmem:[%s12 + $0x1a0] sm:$0xff]
        %v848 = vld [vmem:[%s12 + $0x1a8] sm:$0xff]
        %v849 = vld [vmem:[%s12 + $0x1b0] sm:$0xff]
        %v850 = vld [vmem:[%s12 + $0x1b8] sm:$0xff]
        %v851 = vld [vmem:[%s12 + $0x1c0] sm:$0xff]
        %v852 = vld [vmem:[%s12 + $0x1c8] sm:$0xff]
        %v853 = vld [vmem:[%s12 + $0x1d0] sm:$0xff]
        %v854 = vld [vmem:[%s12 + $0x1d8] sm:$0xff]
        %v855 = vld [vmem:[%s12 + $0x1e0] sm:$0xff]
        %v856 = vld [vmem:[%s12 + $0x1e8] sm:$0xff]
        %v857 = vld [vmem:[%s12 + $0x1f0] sm:$0xff]
        %v858 = vld [vmem:[%s12 + $0x1f8] sm:$0xff]
        %v859 = vld [vmem:[%s13] sm:$0xff]
        %v860 = vld [vmem:[%s13 + $0x8] sm:$0xff]
        %v863 = vperm.slane %v859, 0
        %v864 = vperm.slane %v859, 1
        %v865 = vperm.slane %v859, 2
        %v866 = vperm.slane %v859, 3
        %v867 = vperm.slane %v859, 4
        %v868 = vperm.slane %v859, 5
        %v869 = vperm.slane %v859, 6
        %v870 = vperm.slane %v859, 7
        %v871 = vperm.slane %v860, 0
        %v872 = vperm.slane %v860, 1
        %v873 = vperm.slane %v860, 2
        %v874 = vperm.slane %v860, 3
        %v875 = vperm.slane %v860, 4
        %v876 = vperm.slane %v860, 5
        %v877 = vperm.slane %v860, 6
        %v878 = vperm.slane %v860, 7
        %v896 = vsel %vm582, %v794, 0
        %898 = vmatpush.msra.mxu0 0.0
        %899 = vmatpush.msra.mxu0 0.0
        %900 = vmatpush.msra.mxu0 0.0
        %901 = vmatpush.msra.mxu0 0.0
        %902 = vmatpush.msra.mxu0 0.0
        %903 = vmatpush.msra.mxu0 0.0
        %904 = vmatpush.msra.mxu0 0.0
        %905 = vmatpush.msra.mxu0 0.0
        %906 = vmatpush.msra.mxu0 0.0
        %907 = vmatpush.msra.mxu0 0.0
        %908 = vmatpush.msra.mxu0 0.0
        %909 = vmatpush.msra.mxu0 0.0
        %910 = vmatpush.msra.mxu0 %v843
        %911 = vmatpush.msra.mxu0 %v827
        %912 = vmatpush.msra.mxu0 %v811
        %913 = vmatpush.msra.mxu0 %v795
        %914 = vmatmul.f32.gmra.mxu0 %v896
        %v915 = vpop.f32.mrf.mxu0
        %v916 = vadd.f32 %v863, %v915
        %917 = vdwg.mxu0
        %918 = vmatpush.msra.mxu0 0.0
        %919 = vmatpush.msra.mxu0 0.0
        %920 = vmatpush.msra.mxu0 0.0
        %921 = vmatpush.msra.mxu0 0.0
        %922 = vmatpush.msra.mxu0 0.0
        %923 = vmatpush.msra.mxu0 0.0
        %924 = vmatpush.msra.mxu0 0.0
        %925 = vmatpush.msra.mxu0 0.0
        %926 = vmatpush.msra.mxu0 0.0
        %927 = vmatpush.msra.mxu0 0.0
        %928 = vmatpush.msra.mxu0 0.0
        %929 = vmatpush.msra.mxu0 0.0
        %930 = vmatpush.msra.mxu0 %v844
        %931 = vmatpush.msra.mxu0 %v828
        %932 = vmatpush.msra.mxu0 %v812
        %933 = vmatpush.msra.mxu0 %v796
        %934 = vmatmul.f32.gmra.mxu0 %v896
        %v935 = vpop.f32.mrf.mxu0
        %v936 = vadd.f32 %v864, %v935
        %937 = vdwg.mxu0
        %938 = vmatpush.msra.mxu0 0.0
        %939 = vmatpush.msra.mxu0 0.0
        %940 = vmatpush.msra.mxu0 0.0
        %941 = vmatpush.msra.mxu0 0.0
        %942 = vmatpush.msra.mxu0 0.0
        %943 = vmatpush.msra.mxu0 0.0
        %944 = vmatpush.msra.mxu0 0.0
        %945 = vmatpush.msra.mxu0 0.0
        %946 = vmatpush.msra.mxu0 0.0
        %947 = vmatpush.msra.mxu0 0.0
        %948 = vmatpush.msra.mxu0 0.0
        %949 = vmatpush.msra.mxu0 0.0
        %950 = vmatpush.msra.mxu0 %v845
        %951 = vmatpush.msra.mxu0 %v829
        %952 = vmatpush.msra.mxu0 %v813
        %953 = vmatpush.msra.mxu0 %v797
        %954 = vmatmul.f32.gmra.mxu0 %v896
        %v955 = vpop.f32.mrf.mxu0
        %v956 = vadd.f32 %v865, %v955
        %957 = vdwg.mxu0
        %958 = vmatpush.msra.mxu0 0.0
        %959 = vmatpush.msra.mxu0 0.0
        %960 = vmatpush.msra.mxu0 0.0
        %961 = vmatpush.msra.mxu0 0.0
        %962 = vmatpush.msra.mxu0 0.0
        %963 = vmatpush.msra.mxu0 0.0
        %964 = vmatpush.msra.mxu0 0.0
        %965 = vmatpush.msra.mxu0 0.0
        %966 = vmatpush.msra.mxu0 0.0
        %967 = vmatpush.msra.mxu0 0.0
        %968 = vmatpush.msra.mxu0 0.0
        %969 = vmatpush.msra.mxu0 0.0
        %970 = vmatpush.msra.mxu0 %v846
        %971 = vmatpush.msra.mxu0 %v830
        %972 = vmatpush.msra.mxu0 %v814
        %973 = vmatpush.msra.mxu0 %v798
        %974 = vmatmul.f32.gmra.mxu0 %v896
        %v975 = vpop.f32.mrf.mxu0
        %v976 = vadd.f32 %v866, %v975
        %977 = vdwg.mxu0
        %978 = vmatpush.msra.mxu0 0.0
        %979 = vmatpush.msra.mxu0 0.0
        %980 = vmatpush.msra.mxu0 0.0
        %981 = vmatpush.msra.mxu0 0.0
        %982 = vmatpush.msra.mxu0 0.0
        %983 = vmatpush.msra.mxu0 0.0
        %984 = vmatpush.msra.mxu0 0.0
        %985 = vmatpush.msra.mxu0 0.0
        %986 = vmatpush.msra.mxu0 0.0
        %987 = vmatpush.msra.mxu0 0.0
        %988 = vmatpush.msra.mxu0 0.0
        %989 = vmatpush.msra.mxu0 0.0
        %990 = vmatpush.msra.mxu0 %v847
        %991 = vmatpush.msra.mxu0 %v831
        %992 = vmatpush.msra.mxu0 %v815
        %993 = vmatpush.msra.mxu0 %v799
        %994 = vmatmul.f32.gmra.mxu0 %v896
        %v995 = vpop.f32.mrf.mxu0
        %v996 = vadd.f32 %v867, %v995
        %997 = vdwg.mxu0
        %998 = vmatpush.msra.mxu0 0.0
        %999 = vmatpush.msra.mxu0 0.0
        %1000 = vmatpush.msra.mxu0 0.0
        %1001 = vmatpush.msra.mxu0 0.0
        %1002 = vmatpush.msra.mxu0 0.0
        %1003 = vmatpush.msra.mxu0 0.0
        %1004 = vmatpush.msra.mxu0 0.0
        %1005 = vmatpush.msra.mxu0 0.0
        %1006 = vmatpush.msra.mxu0 0.0
        %1007 = vmatpush.msra.mxu0 0.0
        %1008 = vmatpush.msra.mxu0 0.0
        %1009 = vmatpush.msra.mxu0 0.0
        %1010 = vmatpush.msra.mxu0 %v848
        %1011 = vmatpush.msra.mxu0 %v832
        %1012 = vmatpush.msra.mxu0 %v816
        %1013 = vmatpush.msra.mxu0 %v800
        %1014 = vmatmul.f32.gmra.mxu0 %v896
        %v1015 = vpop.f32.mrf.mxu0
        %v1016 = vadd.f32 %v868, %v1015
        %1017 = vdwg.mxu0
        %1018 = vmatpush.msra.mxu0 0.0
        %1019 = vmatpush.msra.mxu0 0.0
        %1020 = vmatpush.msra.mxu0 0.0
        %1021 = vmatpush.msra.mxu0 0.0
        %1022 = vmatpush.msra.mxu0 0.0
        %1023 = vmatpush.msra.mxu0 0.0
        %1024 = vmatpush.msra.mxu0 0.0
        %1025 = vmatpush.msra.mxu0 0.0
        %1026 = vmatpush.msra.mxu0 0.0
        %1027 = vmatpush.msra.mxu0 0.0
        %1028 = vmatpush.msra.mxu0 0.0
        %1029 = vmatpush.msra.mxu0 0.0
        %1030 = vmatpush.msra.mxu0 %v849
        %1031 = vmatpush.msra.mxu0 %v833
        %1032 = vmatpush.msra.mxu0 %v817
        %1033 = vmatpush.msra.mxu0 %v801
        %1034 = vmatmul.f32.gmra.mxu0 %v896
        %v1035 = vpop.f32.mrf.mxu0
        %v1036 = vadd.f32 %v869, %v1035
        %1037 = vdwg.mxu0
        %1038 = vmatpush.msra.mxu0 0.0
        %1039 = vmatpush.msra.mxu0 0.0
        %1040 = vmatpush.msra.mxu0 0.0
        %1041 = vmatpush.msra.mxu0 0.0
        %1042 = vmatpush.msra.mxu0 0.0
        %1043 = vmatpush.msra.mxu0 0.0
        %1044 = vmatpush.msra.mxu0 0.0
        %1045 = vmatpush.msra.mxu0 0.0
        %1046 = vmatpush.msra.mxu0 0.0
        %1047 = vmatpush.msra.mxu0 0.0
        %1048 = vmatpush.msra.mxu0 0.0
        %1049 = vmatpush.msra.mxu0 0.0
        %1050 = vmatpush.msra.mxu0 %v850
        %1051 = vmatpush.msra.mxu0 %v834
        %1052 = vmatpush.msra.mxu0 %v818
        %1053 = vmatpush.msra.mxu0 %v802
        %1054 = vmatmul.f32.gmra.mxu0 %v896
        %v1055 = vpop.f32.mrf.mxu0
        %v1056 = vadd.f32 %v870, %v1055
        %1057 = vdwg.mxu0
        %1058 = vmatpush.msra.mxu0 0.0
        %1059 = vmatpush.msra.mxu0 0.0
        %1060 = vmatpush.msra.mxu0 0.0
        %1061 = vmatpush.msra.mxu0 0.0
        %1062 = vmatpush.msra.mxu0 0.0
        %1063 = vmatpush.msra.mxu0 0.0
        %1064 = vmatpush.msra.mxu0 0.0
        %1065 = vmatpush.msra.mxu0 0.0
        %1066 = vmatpush.msra.mxu0 0.0
        %1067 = vmatpush.msra.mxu0 0.0
        %1068 = vmatpush.msra.mxu0 0.0
        %1069 = vmatpush.msra.mxu0 0.0
        %1070 = vmatpush.msra.mxu0 %v851
        %1071 = vmatpush.msra.mxu0 %v835
        %1072 = vmatpush.msra.mxu0 %v819
        %1073 = vmatpush.msra.mxu0 %v803
        %1074 = vmatmul.f32.gmra.mxu0 %v896
        %v1075 = vpop.f32.mrf.mxu0
        %v1076 = vadd.f32 %v871, %v1075
        %1077 = vdwg.mxu0
        %1078 = vmatpush.msra.mxu0 0.0
        %1079 = vmatpush.msra.mxu0 0.0
        %1080 = vmatpush.msra.mxu0 0.0
        %1081 = vmatpush.msra.mxu0 0.0
        %1082 = vmatpush.msra.mxu0 0.0
        %1083 = vmatpush.msra.mxu0 0.0
        %1084 = vmatpush.msra.mxu0 0.0
        %1085 = vmatpush.msra.mxu0 0.0
        %1086 = vmatpush.msra.mxu0 0.0
        %1087 = vmatpush.msra.mxu0 0.0
        %1088 = vmatpush.msra.mxu0 0.0
        %1089 = vmatpush.msra.mxu0 0.0
        %1090 = vmatpush.msra.mxu0 %v852
        %1091 = vmatpush.msra.mxu0 %v836
        %1092 = vmatpush.msra.mxu0 %v820
        %1093 = vmatpush.msra.mxu0 %v804
        %1094 = vmatmul.f32.gmra.mxu0 %v896
        %v1095 = vpop.f32.mrf.mxu0
        %v1096 = vadd.f32 %v872, %v1095
        %1097 = vdwg.mxu0
        %1098 = vmatpush.msra.mxu0 0.0
        %1099 = vmatpush.msra.mxu0 0.0
        %1100 = vmatpush.msra.mxu0 0.0
        %1101 = vmatpush.msra.mxu0 0.0
        %1102 = vmatpush.msra.mxu0 0.0
        %1103 = vmatpush.msra.mxu0 0.0
        %1104 = vmatpush.msra.mxu0 0.0
        %1105 = vmatpush.msra.mxu0 0.0
        %1106 = vmatpush.msra.mxu0 0.0
        %1107 = vmatpush.msra.mxu0 0.0
        %1108 = vmatpush.msra.mxu0 0.0
        %1109 = vmatpush.msra.mxu0 0.0
        %1110 = vmatpush.msra.mxu0 %v853
        %1111 = vmatpush.msra.mxu0 %v837
        %1112 = vmatpush.msra.mxu0 %v821
        %1113 = vmatpush.msra.mxu0 %v805
        %1114 = vmatmul.f32.gmra.mxu0 %v896
        %v1115 = vpop.f32.mrf.mxu0
        %v1116 = vadd.f32 %v873, %v1115
        %1117 = vdwg.mxu0
        %1118 = vmatpush.msra.mxu0 0.0
        %1119 = vmatpush.msra.mxu0 0.0
        %1120 = vmatpush.msra.mxu0 0.0
        %1121 = vmatpush.msra.mxu0 0.0
        %1122 = vmatpush.msra.mxu0 0.0
        %1123 = vmatpush.msra.mxu0 0.0
        %1124 = vmatpush.msra.mxu0 0.0
        %1125 = vmatpush.msra.mxu0 0.0
        %1126 = vmatpush.msra.mxu0 0.0
        %1127 = vmatpush.msra.mxu0 0.0
        %1128 = vmatpush.msra.mxu0 0.0
        %1129 = vmatpush.msra.mxu0 0.0
        %1130 = vmatpush.msra.mxu0 %v854
        %1131 = vmatpush.msra.mxu0 %v838
        %1132 = vmatpush.msra.mxu0 %v822
        %1133 = vmatpush.msra.mxu0 %v806
        %1134 = vmatmul.f32.gmra.mxu0 %v896
        %v1135 = vpop.f32.mrf.mxu0
        %v1136 = vadd.f32 %v874, %v1135
        %1137 = vdwg.mxu0
        %1138 = vmatpush.msra.mxu0 0.0
        %1139 = vmatpush.msra.mxu0 0.0
        %1140 = vmatpush.msra.mxu0 0.0
        %1141 = vmatpush.msra.mxu0 0.0
        %1142 = vmatpush.msra.mxu0 0.0
        %1143 = vmatpush.msra.mxu0 0.0
        %1144 = vmatpush.msra.mxu0 0.0
        %1145 = vmatpush.msra.mxu0 0.0
        %1146 = vmatpush.msra.mxu0 0.0
        %1147 = vmatpush.msra.mxu0 0.0
        %1148 = vmatpush.msra.mxu0 0.0
        %1149 = vmatpush.msra.mxu0 0.0
        %1150 = vmatpush.msra.mxu0 %v855
        %1151 = vmatpush.msra.mxu0 %v839
        %1152 = vmatpush.msra.mxu0 %v823
        %1153 = vmatpush.msra.mxu0 %v807
        %1154 = vmatmul.f32.gmra.mxu0 %v896
        %v1155 = vpop.f32.mrf.mxu0
        %v1156 = vadd.f32 %v875, %v1155
        %1157 = vdwg.mxu0
        %1158 = vmatpush.msra.mxu0 0.0
        %1159 = vmatpush.msra.mxu0 0.0
        %1160 = vmatpush.msra.mxu0 0.0
        %1161 = vmatpush.msra.mxu0 0.0
        %1162 = vmatpush.msra.mxu0 0.0
        %1163 = vmatpush.msra.mxu0 0.0
        %1164 = vmatpush.msra.mxu0 0.0
        %1165 = vmatpush.msra.mxu0 0.0
        %1166 = vmatpush.msra.mxu0 0.0
        %1167 = vmatpush.msra.mxu0 0.0
        %1168 = vmatpush.msra.mxu0 0.0
        %1169 = vmatpush.msra.mxu0 0.0
        %1170 = vmatpush.msra.mxu0 %v856
        %1171 = vmatpush.msra.mxu0 %v840
        %1172 = vmatpush.msra.mxu0 %v824
        %1173 = vmatpush.msra.mxu0 %v808
        %1174 = vmatmul.f32.gmra.mxu0 %v896
        %v1175 = vpop.f32.mrf.mxu0
        %v1176 = vadd.f32 %v876, %v1175
        %1177 = vdwg.mxu0
        %1178 = vmatpush.msra.mxu0 0.0
        %1179 = vmatpush.msra.mxu0 0.0
        %1180 = vmatpush.msra.mxu0 0.0
        %1181 = vmatpush.msra.mxu0 0.0
        %1182 = vmatpush.msra.mxu0 0.0
        %1183 = vmatpush.msra.mxu0 0.0
        %1184 = vmatpush.msra.mxu0 0.0
        %1185 = vmatpush.msra.mxu0 0.0
        %1186 = vmatpush.msra.mxu0 0.0
        %1187 = vmatpush.msra.mxu0 0.0
        %1188 = vmatpush.msra.mxu0 0.0
        %1189 = vmatpush.msra.mxu0 0.0
        %1190 = vmatpush.msra.mxu0 %v857
        %1191 = vmatpush.msra.mxu0 %v841
        %1192 = vmatpush.msra.mxu0 %v825
        %1193 = vmatpush.msra.mxu0 %v809
        %1194 = vmatmul.f32.gmra.mxu0 %v896
        %v1195 = vpop.f32.mrf.mxu0
        %v1196 = vadd.f32 %v877, %v1195
        %1197 = vdwg.mxu0
        %1198 = vmatpush.msra.mxu0 0.0
        %1199 = vmatpush.msra.mxu0 0.0
        %1200 = vmatpush.msra.mxu0 0.0
        %1201 = vmatpush.msra.mxu0 0.0
        %1202 = vmatpush.msra.mxu0 0.0
        %1203 = vmatpush.msra.mxu0 0.0
        %1204 = vmatpush.msra.mxu0 0.0
        %1205 = vmatpush.msra.mxu0 0.0
        %1206 = vmatpush.msra.mxu0 0.0
        %1207 = vmatpush.msra.mxu0 0.0
        %1208 = vmatpush.msra.mxu0 0.0
        %1209 = vmatpush.msra.mxu0 0.0
        %1210 = vmatpush.msra.mxu0 %v858
        %1211 = vmatpush.msra.mxu0 %v842
        %1212 = vmatpush.msra.mxu0 %v826
        %1213 = vmatpush.msra.mxu0 %v810
        %1214 = vmatmul.f32.gmra.mxu0 %v896
        %v1215 = vpop.f32.mrf.mxu0
        %v1216 = vadd.f32 %v878, %v1215
        %1217 = vdwg.mxu0
        %v1218 = vmax.f32 %v916, 0.0
        %v1219 = vmax.f32 %v936, 0.0
        %v1220 = vmax.f32 %v956, 0.0
        %v1221 = vmax.f32 %v976, 0.0
        %v1222 = vmax.f32 %v996, 0.0
        %v1223 = vmax.f32 %v1016, 0.0
        %v1224 = vmax.f32 %v1036, 0.0
        %v1225 = vmax.f32 %v1056, 0.0
        %v1226 = vmax.f32 %v1076, 0.0
        %v1227 = vmax.f32 %v1096, 0.0
        %v1228 = vmax.f32 %v1116, 0.0
        %v1229 = vmax.f32 %v1136, 0.0
        %v1230 = vmax.f32 %v1156, 0.0
        %v1231 = vmax.f32 %v1176, 0.0
        %v1232 = vmax.f32 %v1196, 0.0
        %v1233 = vmax.f32 %v1216, 0.0
        %v1234 = vld [vmem:[%s14] sm:$0xff]
        %v1235 = vld [vmem:[%s14 + $0x8] sm:$0xff]
        %v1236 = vld [vmem:[%s14 + $0x10] sm:$0xff]
        %v1237 = vld [vmem:[%s14 + $0x18] sm:$0xff]
        %v1238 = vld [vmem:[%s14 + $0x20] sm:$0xff]
        %v1239 = vld [vmem:[%s14 + $0x28] sm:$0xff]
        %v1240 = vld [vmem:[%s14 + $0x30] sm:$0xff]
        %v1241 = vld [vmem:[%s14 + $0x38] sm:$0xff]
        %v1242 = vld [vmem:[%s14 + $0x40] sm:$0xff]
        %v1243 = vld [vmem:[%s14 + $0x48] sm:$0xff]
        %v1244 = vld [vmem:[%s14 + $0x50] sm:$0xff]
        %v1245 = vld [vmem:[%s14 + $0x58] sm:$0xff]
        %v1246 = vld [vmem:[%s14 + $0x60] sm:$0xff]
        %v1247 = vld [vmem:[%s14 + $0x68] sm:$0xff]
        %v1248 = vld [vmem:[%s14 + $0x70] sm:$0xff]
        %v1249 = vld [vmem:[%s14 + $0x78] sm:$0xff]
        %v1250 = vld [vmem:[%s14 + $0x80] sm:$0xff]
        %v1251 = vld [vmem:[%s14 + $0x88] sm:$0xff]
        %v1252 = vld [vmem:[%s14 + $0x90] sm:$0xff]
        %v1253 = vld [vmem:[%s14 + $0x98] sm:$0xff]
        %v1254 = vld [vmem:[%s14 + $0xa0] sm:$0xff]
        %v1255 = vld [vmem:[%s14 + $0xa8] sm:$0xff]
        %v1256 = vld [vmem:[%s14 + $0xb0] sm:$0xff]
        %v1257 = vld [vmem:[%s14 + $0xb8] sm:$0xff]
        %v1258 = vld [vmem:[%s14 + $0xc0] sm:$0xff]
        %v1259 = vld [vmem:[%s14 + $0xc8] sm:$0xff]
        %v1260 = vld [vmem:[%s14 + $0xd0] sm:$0xff]
        %v1261 = vld [vmem:[%s14 + $0xd8] sm:$0xff]
        %v1262 = vld [vmem:[%s14 + $0xe0] sm:$0xff]
        %v1263 = vld [vmem:[%s14 + $0xe8] sm:$0xff]
        %v1264 = vld [vmem:[%s14 + $0xf0] sm:$0xff]
        %v1265 = vld [vmem:[%s14 + $0xf8] sm:$0xff]
        %v1266 = vld [vmem:[%s14 + $0x100] sm:$0xff]
        %v1267 = vld [vmem:[%s14 + $0x108] sm:$0xff]
        %v1268 = vld [vmem:[%s14 + $0x110] sm:$0xff]
        %v1269 = vld [vmem:[%s14 + $0x118] sm:$0xff]
        %v1270 = vld [vmem:[%s14 + $0x120] sm:$0xff]
        %v1271 = vld [vmem:[%s14 + $0x128] sm:$0xff]
        %v1272 = vld [vmem:[%s14 + $0x130] sm:$0xff]
        %v1273 = vld [vmem:[%s14 + $0x138] sm:$0xff]
        %v1274 = vld [vmem:[%s14 + $0x140] sm:$0xff]
        %v1275 = vld [vmem:[%s14 + $0x148] sm:$0xff]
        %v1276 = vld [vmem:[%s14 + $0x150] sm:$0xff]
        %v1277 = vld [vmem:[%s14 + $0x158] sm:$0xff]
        %v1278 = vld [vmem:[%s14 + $0x160] sm:$0xff]
        %v1279 = vld [vmem:[%s14 + $0x168] sm:$0xff]
        %v1280 = vld [vmem:[%s14 + $0x170] sm:$0xff]
        %v1281 = vld [vmem:[%s14 + $0x178] sm:$0xff]
        %v1282 = vld [vmem:[%s14 + $0x180] sm:$0xff]
        %v1283 = vld [vmem:[%s14 + $0x188] sm:$0xff]
        %v1284 = vld [vmem:[%s14 + $0x190] sm:$0xff]
        %v1285 = vld [vmem:[%s14 + $0x198] sm:$0xff]
        %v1286 = vld [vmem:[%s14 + $0x1a0] sm:$0xff]
        %v1287 = vld [vmem:[%s14 + $0x1a8] sm:$0xff]
        %v1288 = vld [vmem:[%s14 + $0x1b0] sm:$0xff]
        %v1289 = vld [vmem:[%s14 + $0x1b8] sm:$0xff]
        %v1290 = vld [vmem:[%s14 + $0x1c0] sm:$0xff]
        %v1291 = vld [vmem:[%s14 + $0x1c8] sm:$0xff]
        %v1292 = vld [vmem:[%s14 + $0x1d0] sm:$0xff]
        %v1293 = vld [vmem:[%s14 + $0x1d8] sm:$0xff]
        %v1294 = vld [vmem:[%s14 + $0x1e0] sm:$0xff]
        %v1295 = vld [vmem:[%s14 + $0x1e8] sm:$0xff]
        %v1296 = vld [vmem:[%s14 + $0x1f0] sm:$0xff]
        %v1297 = vld [vmem:[%s14 + $0x1f8] sm:$0xff]
        %v1298 = vld [vmem:[%s14 + $0x200] sm:$0xff]
        %v1299 = vld [vmem:[%s14 + $0x208] sm:$0xff]
        %v1300 = vld [vmem:[%s14 + $0x210] sm:$0xff]
        %v1301 = vld [vmem:[%s14 + $0x218] sm:$0xff]
        %v1302 = vld [vmem:[%s14 + $0x220] sm:$0xff]
        %v1303 = vld [vmem:[%s14 + $0x228] sm:$0xff]
        %v1304 = vld [vmem:[%s14 + $0x230] sm:$0xff]
        %v1305 = vld [vmem:[%s14 + $0x238] sm:$0xff]
        %v1306 = vld [vmem:[%s14 + $0x240] sm:$0xff]
        %v1307 = vld [vmem:[%s14 + $0x248] sm:$0xff]
        %v1308 = vld [vmem:[%s14 + $0x250] sm:$0xff]
        %v1309 = vld [vmem:[%s14 + $0x258] sm:$0xff]
        %v1310 = vld [vmem:[%s14 + $0x260] sm:$0xff]
        %v1311 = vld [vmem:[%s14 + $0x268] sm:$0xff]
        %v1312 = vld [vmem:[%s14 + $0x270] sm:$0xff]
        %v1313 = vld [vmem:[%s14 + $0x278] sm:$0xff]
        %v1314 = vld [vmem:[%s14 + $0x280] sm:$0xff]
        %v1315 = vld [vmem:[%s14 + $0x288] sm:$0xff]
        %v1316 = vld [vmem:[%s14 + $0x290] sm:$0xff]
        %v1317 = vld [vmem:[%s14 + $0x298] sm:$0xff]
        %v1318 = vld [vmem:[%s14 + $0x2a0] sm:$0xff]
        %v1319 = vld [vmem:[%s14 + $0x2a8] sm:$0xff]
        %v1320 = vld [vmem:[%s14 + $0x2b0] sm:$0xff]
        %v1321 = vld [vmem:[%s14 + $0x2b8] sm:$0xff]
        %v1322 = vld [vmem:[%s14 + $0x2c0] sm:$0xff]
        %v1323 = vld [vmem:[%s14 + $0x2c8] sm:$0xff]
        %v1324 = vld [vmem:[%s14 + $0x2d0] sm:$0xff]
        %v1325 = vld [vmem:[%s14 + $0x2d8] sm:$0xff]
        %v1326 = vld [vmem:[%s14 + $0x2e0] sm:$0xff]
        %v1327 = vld [vmem:[%s14 + $0x2e8] sm:$0xff]
        %v1328 = vld [vmem:[%s14 + $0x2f0] sm:$0xff]
        %v1329 = vld [vmem:[%s14 + $0x2f8] sm:$0xff]
        %v1330 = vld [vmem:[%s14 + $0x300] sm:$0xff]
        %v1331 = vld [vmem:[%s14 + $0x308] sm:$0xff]
        %v1332 = vld [vmem:[%s14 + $0x310] sm:$0xff]
        %v1333 = vld [vmem:[%s14 + $0x318] sm:$0xff]
        %v1334 = vld [vmem:[%s14 + $0x320] sm:$0xff]
        %v1335 = vld [vmem:[%s14 + $0x328] sm:$0xff]
        %v1336 = vld [vmem:[%s14 + $0x330] sm:$0xff]
        %v1337 = vld [vmem:[%s14 + $0x338] sm:$0xff]
        %v1338 = vld [vmem:[%s14 + $0x340] sm:$0xff]
        %v1339 = vld [vmem:[%s14 + $0x348] sm:$0xff]
        %v1340 = vld [vmem:[%s14 + $0x350] sm:$0xff]
        %v1341 = vld [vmem:[%s14 + $0x358] sm:$0xff]
        %v1342 = vld [vmem:[%s14 + $0x360] sm:$0xff]
        %v1343 = vld [vmem:[%s14 + $0x368] sm:$0xff]
        %v1344 = vld [vmem:[%s14 + $0x370] sm:$0xff]
        %v1345 = vld [vmem:[%s14 + $0x378] sm:$0xff]
        %v1346 = vld [vmem:[%s14 + $0x380] sm:$0xff]
        %v1347 = vld [vmem:[%s14 + $0x388] sm:$0xff]
        %v1348 = vld [vmem:[%s14 + $0x390] sm:$0xff]
        %v1349 = vld [vmem:[%s14 + $0x398] sm:$0xff]
        %v1350 = vld [vmem:[%s14 + $0x3a0] sm:$0xff]
        %v1351 = vld [vmem:[%s14 + $0x3a8] sm:$0xff]
        %v1352 = vld [vmem:[%s14 + $0x3b0] sm:$0xff]
        %v1353 = vld [vmem:[%s14 + $0x3b8] sm:$0xff]
        %v1354 = vld [vmem:[%s14 + $0x3c0] sm:$0xff]
        %v1355 = vld [vmem:[%s14 + $0x3c8] sm:$0xff]
        %v1356 = vld [vmem:[%s14 + $0x3d0] sm:$0xff]
        %v1357 = vld [vmem:[%s14 + $0x3d8] sm:$0xff]
        %v1358 = vld [vmem:[%s14 + $0x3e0] sm:$0xff]
        %v1359 = vld [vmem:[%s14 + $0x3e8] sm:$0xff]
        %v1360 = vld [vmem:[%s14 + $0x3f0] sm:$0xff]
        %v1361 = vld [vmem:[%s14 + $0x3f8] sm:$0xff]
        %v1362 = vld [vmem:[%s14 + $0x400] sm:$0xff]
        %v1363 = vld [vmem:[%s14 + $0x408] sm:$0xff]
        %v1364 = vld [vmem:[%s14 + $0x410] sm:$0xff]
        %v1365 = vld [vmem:[%s14 + $0x418] sm:$0xff]
        %v1366 = vld [vmem:[%s14 + $0x420] sm:$0xff]
        %v1367 = vld [vmem:[%s14 + $0x428] sm:$0xff]
        %v1368 = vld [vmem:[%s14 + $0x430] sm:$0xff]
        %v1369 = vld [vmem:[%s14 + $0x438] sm:$0xff]
        %v1370 = vld [vmem:[%s14 + $0x440] sm:$0xff]
        %v1371 = vld [vmem:[%s14 + $0x448] sm:$0xff]
        %v1372 = vld [vmem:[%s14 + $0x450] sm:$0xff]
        %v1373 = vld [vmem:[%s14 + $0x458] sm:$0xff]
        %v1374 = vld [vmem:[%s14 + $0x460] sm:$0xff]
        %v1375 = vld [vmem:[%s14 + $0x468] sm:$0xff]
        %v1376 = vld [vmem:[%s14 + $0x470] sm:$0xff]
        %v1377 = vld [vmem:[%s14 + $0x478] sm:$0xff]
        %v1378 = vld [vmem:[%s14 + $0x480] sm:$0xff]
        %v1379 = vld [vmem:[%s14 + $0x488] sm:$0xff]
        %v1380 = vld [vmem:[%s14 + $0x490] sm:$0xff]
        %v1381 = vld [vmem:[%s14 + $0x498] sm:$0xff]
        %v1382 = vld [vmem:[%s14 + $0x4a0] sm:$0xff]
        %v1383 = vld [vmem:[%s14 + $0x4a8] sm:$0xff]
        %v1384 = vld [vmem:[%s14 + $0x4b0] sm:$0xff]
        %v1385 = vld [vmem:[%s14 + $0x4b8] sm:$0xff]
        %v1386 = vld [vmem:[%s14 + $0x4c0] sm:$0xff]
        %v1387 = vld [vmem:[%s14 + $0x4c8] sm:$0xff]
        %v1388 = vld [vmem:[%s14 + $0x4d0] sm:$0xff]
        %v1389 = vld [vmem:[%s14 + $0x4d8] sm:$0xff]
        %v1390 = vld [vmem:[%s14 + $0x4e0] sm:$0xff]
        %v1391 = vld [vmem:[%s14 + $0x4e8] sm:$0xff]
        %v1392 = vld [vmem:[%s14 + $0x4f0] sm:$0xff]
        %v1393 = vld [vmem:[%s14 + $0x4f8] sm:$0xff]
        %v1394 = vld [vmem:[%s14 + $0x500] sm:$0xff]
        %v1395 = vld [vmem:[%s14 + $0x508] sm:$0xff]
        %v1396 = vld [vmem:[%s14 + $0x510] sm:$0xff]
        %v1397 = vld [vmem:[%s14 + $0x518] sm:$0xff]
        %v1398 = vld [vmem:[%s14 + $0x520] sm:$0xff]
        %v1399 = vld [vmem:[%s14 + $0x528] sm:$0xff]
        %v1400 = vld [vmem:[%s14 + $0x530] sm:$0xff]
        %v1401 = vld [vmem:[%s14 + $0x538] sm:$0xff]
        %v1402 = vld [vmem:[%s14 + $0x540] sm:$0xff]
        %v1403 = vld [vmem:[%s14 + $0x548] sm:$0xff]
        %v1404 = vld [vmem:[%s14 + $0x550] sm:$0xff]
        %v1405 = vld [vmem:[%s14 + $0x558] sm:$0xff]
        %v1406 = vld [vmem:[%s14 + $0x560] sm:$0xff]
        %v1407 = vld [vmem:[%s14 + $0x568] sm:$0xff]
        %v1408 = vld [vmem:[%s14 + $0x570] sm:$0xff]
        %v1409 = vld [vmem:[%s14 + $0x578] sm:$0xff]
        %v1410 = vld [vmem:[%s14 + $0x580] sm:$0xff]
        %v1411 = vld [vmem:[%s14 + $0x588] sm:$0xff]
        %v1412 = vld [vmem:[%s14 + $0x590] sm:$0xff]
        %v1413 = vld [vmem:[%s14 + $0x598] sm:$0xff]
        %v1414 = vld [vmem:[%s14 + $0x5a0] sm:$0xff]
        %v1415 = vld [vmem:[%s14 + $0x5a8] sm:$0xff]
        %v1416 = vld [vmem:[%s14 + $0x5b0] sm:$0xff]
        %v1417 = vld [vmem:[%s14 + $0x5b8] sm:$0xff]
        %v1418 = vld [vmem:[%s14 + $0x5c0] sm:$0xff]
        %v1419 = vld [vmem:[%s14 + $0x5c8] sm:$0xff]
        %v1420 = vld [vmem:[%s14 + $0x5d0] sm:$0xff]
        %v1421 = vld [vmem:[%s14 + $0x5d8] sm:$0xff]
        %v1422 = vld [vmem:[%s14 + $0x5e0] sm:$0xff]
        %v1423 = vld [vmem:[%s14 + $0x5e8] sm:$0xff]
        %v1424 = vld [vmem:[%s14 + $0x5f0] sm:$0xff]
        %v1425 = vld [vmem:[%s14 + $0x5f8] sm:$0xff]
        %v1426 = vld [vmem:[%s14 + $0x600] sm:$0xff]
        %v1427 = vld [vmem:[%s14 + $0x608] sm:$0xff]
        %v1428 = vld [vmem:[%s14 + $0x610] sm:$0xff]
        %v1429 = vld [vmem:[%s14 + $0x618] sm:$0xff]
        %v1430 = vld [vmem:[%s14 + $0x620] sm:$0xff]
        %v1431 = vld [vmem:[%s14 + $0x628] sm:$0xff]
        %v1432 = vld [vmem:[%s14 + $0x630] sm:$0xff]
        %v1433 = vld [vmem:[%s14 + $0x638] sm:$0xff]
        %v1434 = vld [vmem:[%s14 + $0x640] sm:$0xff]
        %v1435 = vld [vmem:[%s14 + $0x648] sm:$0xff]
        %v1436 = vld [vmem:[%s14 + $0x650] sm:$0xff]
        %v1437 = vld [vmem:[%s14 + $0x658] sm:$0xff]
        %v1438 = vld [vmem:[%s14 + $0x660] sm:$0xff]
        %v1439 = vld [vmem:[%s14 + $0x668] sm:$0xff]
        %v1440 = vld [vmem:[%s14 + $0x670] sm:$0xff]
        %v1441 = vld [vmem:[%s14 + $0x678] sm:$0xff]
        %v1442 = vld [vmem:[%s14 + $0x680] sm:$0xff]
        %v1443 = vld [vmem:[%s14 + $0x688] sm:$0xff]
        %v1444 = vld [vmem:[%s14 + $0x690] sm:$0xff]
        %v1445 = vld [vmem:[%s14 + $0x698] sm:$0xff]
        %v1446 = vld [vmem:[%s14 + $0x6a0] sm:$0xff]
        %v1447 = vld [vmem:[%s14 + $0x6a8] sm:$0xff]
        %v1448 = vld [vmem:[%s14 + $0x6b0] sm:$0xff]
        %v1449 = vld [vmem:[%s14 + $0x6b8] sm:$0xff]
        %v1450 = vld [vmem:[%s14 + $0x6c0] sm:$0xff]
        %v1451 = vld [vmem:[%s14 + $0x6c8] sm:$0xff]
        %v1452 = vld [vmem:[%s14 + $0x6d0] sm:$0xff]
        %v1453 = vld [vmem:[%s14 + $0x6d8] sm:$0xff]
        %v1454 = vld [vmem:[%s14 + $0x6e0] sm:$0xff]
        %v1455 = vld [vmem:[%s14 + $0x6e8] sm:$0xff]
        %v1456 = vld [vmem:[%s14 + $0x6f0] sm:$0xff]
        %v1457 = vld [vmem:[%s14 + $0x6f8] sm:$0xff]
        %v1458 = vld [vmem:[%s14 + $0x700] sm:$0xff]
        %v1459 = vld [vmem:[%s14 + $0x708] sm:$0xff]
        %v1460 = vld [vmem:[%s14 + $0x710] sm:$0xff]
        %v1461 = vld [vmem:[%s14 + $0x718] sm:$0xff]
        %v1462 = vld [vmem:[%s14 + $0x720] sm:$0xff]
        %v1463 = vld [vmem:[%s14 + $0x728] sm:$0xff]
        %v1464 = vld [vmem:[%s14 + $0x730] sm:$0xff]
        %v1465 = vld [vmem:[%s14 + $0x738] sm:$0xff]
        %v1466 = vld [vmem:[%s14 + $0x740] sm:$0xff]
        %v1467 = vld [vmem:[%s14 + $0x748] sm:$0xff]
        %v1468 = vld [vmem:[%s14 + $0x750] sm:$0xff]
        %v1469 = vld [vmem:[%s14 + $0x758] sm:$0xff]
        %v1470 = vld [vmem:[%s14 + $0x760] sm:$0xff]
        %v1471 = vld [vmem:[%s14 + $0x768] sm:$0xff]
        %v1472 = vld [vmem:[%s14 + $0x770] sm:$0xff]
        %v1473 = vld [vmem:[%s14 + $0x778] sm:$0xff]
        %v1474 = vld [vmem:[%s14 + $0x780] sm:$0xff]
        %v1475 = vld [vmem:[%s14 + $0x788] sm:$0xff]
        %v1476 = vld [vmem:[%s14 + $0x790] sm:$0xff]
        %v1477 = vld [vmem:[%s14 + $0x798] sm:$0xff]
        %v1478 = vld [vmem:[%s14 + $0x7a0] sm:$0xff]
        %v1479 = vld [vmem:[%s14 + $0x7a8] sm:$0xff]
        %v1480 = vld [vmem:[%s14 + $0x7b0] sm:$0xff]
        %v1481 = vld [vmem:[%s14 + $0x7b8] sm:$0xff]
        %v1482 = vld [vmem:[%s14 + $0x7c0] sm:$0xff]
        %v1483 = vld [vmem:[%s14 + $0x7c8] sm:$0xff]
        %v1484 = vld [vmem:[%s14 + $0x7d0] sm:$0xff]
        %v1485 = vld [vmem:[%s14 + $0x7d8] sm:$0xff]
        %v1486 = vld [vmem:[%s14 + $0x7e0] sm:$0xff]
        %v1487 = vld [vmem:[%s14 + $0x7e8] sm:$0xff]
        %v1488 = vld [vmem:[%s14 + $0x7f0] sm:$0xff]
        %v1489 = vld [vmem:[%s14 + $0x7f8] sm:$0xff]
        %v1490 = vld [vmem:[%s15] sm:$0x1]
        %v1492 = vperm.slane %v1490, 0
        %1494 = vmatpush.msra.mxu0 %v1249
        %1495 = vmatpush.msra.mxu0 %v1248
        %1496 = vmatpush.msra.mxu0 %v1247
        %1497 = vmatpush.msra.mxu0 %v1246
        %1498 = vmatpush.msra.mxu0 %v1245
        %1499 = vmatpush.msra.mxu0 %v1244
        %1500 = vmatpush.msra.mxu0 %v1243
        %1501 = vmatpush.msra.mxu0 %v1242
        %1502 = vmatpush.msra.mxu0 %v1241
        %1503 = vmatpush.msra.mxu0 %v1240
        %1504 = vmatpush.msra.mxu0 %v1239
        %1505 = vmatpush.msra.mxu0 %v1238
        %1506 = vmatpush.msra.mxu0 %v1237
        %1507 = vmatpush.msra.mxu0 %v1236
        %1508 = vmatpush.msra.mxu0 %v1235
        %1509 = vmatpush.msra.mxu0 %v1234
        %1510 = vmatmul.f32.gmra.mxu0 %v1218
        %v1511 = vpop.f32.mrf.mxu0
        %v1512 = vadd.f32 %v1492, %v1511
        %1513 = vdwg.mxu0
        %1514 = vmatpush.msra.mxu0 %v1265
        %1515 = vmatpush.msra.mxu0 %v1264
        %1516 = vmatpush.msra.mxu0 %v1263
        %1517 = vmatpush.msra.mxu0 %v1262
        %1518 = vmatpush.msra.mxu0 %v1261
        %1519 = vmatpush.msra.mxu0 %v1260
        %1520 = vmatpush.msra.mxu0 %v1259
        %1521 = vmatpush.msra.mxu0 %v1258
        %1522 = vmatpush.msra.mxu0 %v1257
        %1523 = vmatpush.msra.mxu0 %v1256
        %1524 = vmatpush.msra.mxu0 %v1255
        %1525 = vmatpush.msra.mxu0 %v1254
        %1526 = vmatpush.msra.mxu0 %v1253
        %1527 = vmatpush.msra.mxu0 %v1252
        %1528 = vmatpush.msra.mxu0 %v1251
        %1529 = vmatpush.msra.mxu0 %v1250
        %1530 = vmatmul.f32.gmra.mxu0 %v1219
        %v1531 = vpop.f32.mrf.mxu0
        %v1532 = vadd.f32 %v1512, %v1531
        %1533 = vdwg.mxu0
        %1534 = vmatpush.msra.mxu0 %v1281
        %1535 = vmatpush.msra.mxu0 %v1280
        %1536 = vmatpush.msra.mxu0 %v1279
        %1537 = vmatpush.msra.mxu0 %v1278
        %1538 = vmatpush.msra.mxu0 %v1277
        %1539 = vmatpush.msra.mxu0 %v1276
        %1540 = vmatpush.msra.mxu0 %v1275
        %1541 = vmatpush.msra.mxu0 %v1274
        %1542 = vmatpush.msra.mxu0 %v1273
        %1543 = vmatpush.msra.mxu0 %v1272
        %1544 = vmatpush.msra.mxu0 %v1271
        %1545 = vmatpush.msra.mxu0 %v1270
        %1546 = vmatpush.msra.mxu0 %v1269
        %1547 = vmatpush.msra.mxu0 %v1268
        %1548 = vmatpush.msra.mxu0 %v1267
        %1549 = vmatpush.msra.mxu0 %v1266
        %1550 = vmatmul.f32.gmra.mxu0 %v1220
        %v1551 = vpop.f32.mrf.mxu0
        %v1552 = vadd.f32 %v1532, %v1551
        %1553 = vdwg.mxu0
        %1554 = vmatpush.msra.mxu0 %v1297
        %1555 = vmatpush.msra.mxu0 %v1296
        %1556 = vmatpush.msra.mxu0 %v1295
        %1557 = vmatpush.msra.mxu0 %v1294
        %1558 = vmatpush.msra.mxu0 %v1293
        %1559 = vmatpush.msra.mxu0 %v1292
        %1560 = vmatpush.msra.mxu0 %v1291
        %1561 = vmatpush.msra.mxu0 %v1290
        %1562 = vmatpush.msra.mxu0 %v1289
        %1563 = vmatpush.msra.mxu0 %v1288
        %1564 = vmatpush.msra.mxu0 %v1287
        %1565 = vmatpush.msra.mxu0 %v1286
        %1566 = vmatpush.msra.mxu0 %v1285
        %1567 = vmatpush.msra.mxu0 %v1284
        %1568 = vmatpush.msra.mxu0 %v1283
        %1569 = vmatpush.msra.mxu0 %v1282
        %1570 = vmatmul.f32.gmra.mxu0 %v1221
        %v1571 = vpop.f32.mrf.mxu0
        %v1572 = vadd.f32 %v1552, %v1571
        %1573 = vdwg.mxu0
        %1574 = vmatpush.msra.mxu0 %v1313
        %1575 = vmatpush.msra.mxu0 %v1312
        %1576 = vmatpush.msra.mxu0 %v1311
        %1577 = vmatpush.msra.mxu0 %v1310
        %1578 = vmatpush.msra.mxu0 %v1309
        %1579 = vmatpush.msra.mxu0 %v1308
        %1580 = vmatpush.msra.mxu0 %v1307
        %1581 = vmatpush.msra.mxu0 %v1306
        %1582 = vmatpush.msra.mxu0 %v1305
        %1583 = vmatpush.msra.mxu0 %v1304
        %1584 = vmatpush.msra.mxu0 %v1303
        %1585 = vmatpush.msra.mxu0 %v1302
        %1586 = vmatpush.msra.mxu0 %v1301
        %1587 = vmatpush.msra.mxu0 %v1300
        %1588 = vmatpush.msra.mxu0 %v1299
        %1589 = vmatpush.msra.mxu0 %v1298
        %1590 = vmatmul.f32.gmra.mxu0 %v1222
        %v1591 = vpop.f32.mrf.mxu0
        %v1592 = vadd.f32 %v1572, %v1591
        %1593 = vdwg.mxu0
        %1594 = vmatpush.msra.mxu0 %v1329
        %1595 = vmatpush.msra.mxu0 %v1328
        %1596 = vmatpush.msra.mxu0 %v1327
        %1597 = vmatpush.msra.mxu0 %v1326
        %1598 = vmatpush.msra.mxu0 %v1325
        %1599 = vmatpush.msra.mxu0 %v1324
        %1600 = vmatpush.msra.mxu0 %v1323
        %1601 = vmatpush.msra.mxu0 %v1322
        %1602 = vmatpush.msra.mxu0 %v1321
        %1603 = vmatpush.msra.mxu0 %v1320
        %1604 = vmatpush.msra.mxu0 %v1319
        %1605 = vmatpush.msra.mxu0 %v1318
        %1606 = vmatpush.msra.mxu0 %v1317
        %1607 = vmatpush.msra.mxu0 %v1316
        %1608 = vmatpush.msra.mxu0 %v1315
        %1609 = vmatpush.msra.mxu0 %v1314
        %1610 = vmatmul.f32.gmra.mxu0 %v1223
        %v1611 = vpop.f32.mrf.mxu0
        %v1612 = vadd.f32 %v1592, %v1611
        %1613 = vdwg.mxu0
        %1614 = vmatpush.msra.mxu0 %v1345
        %1615 = vmatpush.msra.mxu0 %v1344
        %1616 = vmatpush.msra.mxu0 %v1343
        %1617 = vmatpush.msra.mxu0 %v1342
        %1618 = vmatpush.msra.mxu0 %v1341
        %1619 = vmatpush.msra.mxu0 %v1340
        %1620 = vmatpush.msra.mxu0 %v1339
        %1621 = vmatpush.msra.mxu0 %v1338
        %1622 = vmatpush.msra.mxu0 %v1337
        %1623 = vmatpush.msra.mxu0 %v1336
        %1624 = vmatpush.msra.mxu0 %v1335
        %1625 = vmatpush.msra.mxu0 %v1334
        %1626 = vmatpush.msra.mxu0 %v1333
        %1627 = vmatpush.msra.mxu0 %v1332
        %1628 = vmatpush.msra.mxu0 %v1331
        %1629 = vmatpush.msra.mxu0 %v1330
        %1630 = vmatmul.f32.gmra.mxu0 %v1224
        %v1631 = vpop.f32.mrf.mxu0
        %v1632 = vadd.f32 %v1612, %v1631
        %1633 = vdwg.mxu0
        %1634 = vmatpush.msra.mxu0 %v1361
        %1635 = vmatpush.msra.mxu0 %v1360
        %1636 = vmatpush.msra.mxu0 %v1359
        %1637 = vmatpush.msra.mxu0 %v1358
        %1638 = vmatpush.msra.mxu0 %v1357
        %1639 = vmatpush.msra.mxu0 %v1356
        %1640 = vmatpush.msra.mxu0 %v1355
        %1641 = vmatpush.msra.mxu0 %v1354
        %1642 = vmatpush.msra.mxu0 %v1353
        %1643 = vmatpush.msra.mxu0 %v1352
        %1644 = vmatpush.msra.mxu0 %v1351
        %1645 = vmatpush.msra.mxu0 %v1350
        %1646 = vmatpush.msra.mxu0 %v1349
        %1647 = vmatpush.msra.mxu0 %v1348
        %1648 = vmatpush.msra.mxu0 %v1347
        %1649 = vmatpush.msra.mxu0 %v1346
        %1650 = vmatmul.f32.gmra.mxu0 %v1225
        %v1651 = vpop.f32.mrf.mxu0
        %v1652 = vadd.f32 %v1632, %v1651
        %1653 = vdwg.mxu0
        %1654 = vmatpush.msra.mxu0 %v1377
        %1655 = vmatpush.msra.mxu0 %v1376
        %1656 = vmatpush.msra.mxu0 %v1375
        %1657 = vmatpush.msra.mxu0 %v1374
        %1658 = vmatpush.msra.mxu0 %v1373
        %1659 = vmatpush.msra.mxu0 %v1372
        %1660 = vmatpush.msra.mxu0 %v1371
        %1661 = vmatpush.msra.mxu0 %v1370
        %1662 = vmatpush.msra.mxu0 %v1369
        %1663 = vmatpush.msra.mxu0 %v1368
        %1664 = vmatpush.msra.mxu0 %v1367
        %1665 = vmatpush.msra.mxu0 %v1366
        %1666 = vmatpush.msra.mxu0 %v1365
        %1667 = vmatpush.msra.mxu0 %v1364
        %1668 = vmatpush.msra.mxu0 %v1363
        %1669 = vmatpush.msra.mxu0 %v1362
        %1670 = vmatmul.f32.gmra.mxu0 %v1226
        %v1671 = vpop.f32.mrf.mxu0
        %v1672 = vadd.f32 %v1652, %v1671
        %1673 = vdwg.mxu0
        %1674 = vmatpush.msra.mxu0 %v1393
        %1675 = vmatpush.msra.mxu0 %v1392
        %1676 = vmatpush.msra.mxu0 %v1391
        %1677 = vmatpush.msra.mxu0 %v1390
        %1678 = vmatpush.msra.mxu0 %v1389
        %1679 = vmatpush.msra.mxu0 %v1388
        %1680 = vmatpush.msra.mxu0 %v1387
        %1681 = vmatpush.msra.mxu0 %v1386
        %1682 = vmatpush.msra.mxu0 %v1385
        %1683 = vmatpush.msra.mxu0 %v1384
        %1684 = vmatpush.msra.mxu0 %v1383
        %1685 = vmatpush.msra.mxu0 %v1382
        %1686 = vmatpush.msra.mxu0 %v1381
        %1687 = vmatpush.msra.mxu0 %v1380
        %1688 = vmatpush.msra.mxu0 %v1379
        %1689 = vmatpush.msra.mxu0 %v1378
        %1690 = vmatmul.f32.gmra.mxu0 %v1227
        %v1691 = vpop.f32.mrf.mxu0
        %v1692 = vadd.f32 %v1672, %v1691
        %1693 = vdwg.mxu0
        %1694 = vmatpush.msra.mxu0 %v1409
        %1695 = vmatpush.msra.mxu0 %v1408
        %1696 = vmatpush.msra.mxu0 %v1407
        %1697 = vmatpush.msra.mxu0 %v1406
        %1698 = vmatpush.msra.mxu0 %v1405
        %1699 = vmatpush.msra.mxu0 %v1404
        %1700 = vmatpush.msra.mxu0 %v1403
        %1701 = vmatpush.msra.mxu0 %v1402
        %1702 = vmatpush.msra.mxu0 %v1401
        %1703 = vmatpush.msra.mxu0 %v1400
        %1704 = vmatpush.msra.mxu0 %v1399
        %1705 = vmatpush.msra.mxu0 %v1398
        %1706 = vmatpush.msra.mxu0 %v1397
        %1707 = vmatpush.msra.mxu0 %v1396
        %1708 = vmatpush.msra.mxu0 %v1395
        %1709 = vmatpush.msra.mxu0 %v1394
        %1710 = vmatmul.f32.gmra.mxu0 %v1228
        %v1711 = vpop.f32.mrf.mxu0
        %v1712 = vadd.f32 %v1692, %v1711
        %1713 = vdwg.mxu0
        %1714 = vmatpush.msra.mxu0 %v1425
        %1715 = vmatpush.msra.mxu0 %v1424
        %1716 = vmatpush.msra.mxu0 %v1423
        %1717 = vmatpush.msra.mxu0 %v1422
        %1718 = vmatpush.msra.mxu0 %v1421
        %1719 = vmatpush.msra.mxu0 %v1420
        %1720 = vmatpush.msra.mxu0 %v1419
        %1721 = vmatpush.msra.mxu0 %v1418
        %1722 = vmatpush.msra.mxu0 %v1417
        %1723 = vmatpush.msra.mxu0 %v1416
        %1724 = vmatpush.msra.mxu0 %v1415
        %1725 = vmatpush.msra.mxu0 %v1414
        %1726 = vmatpush.msra.mxu0 %v1413
        %1727 = vmatpush.msra.mxu0 %v1412
        %1728 = vmatpush.msra.mxu0 %v1411
        %1729 = vmatpush.msra.mxu0 %v1410
        %1730 = vmatmul.f32.gmra.mxu0 %v1229
        %v1731 = vpop.f32.mrf.mxu0
        %v1732 = vadd.f32 %v1712, %v1731
        %1733 = vdwg.mxu0
        %1734 = vmatpush.msra.mxu0 %v1441
        %1735 = vmatpush.msra.mxu0 %v1440
        %1736 = vmatpush.msra.mxu0 %v1439
        %1737 = vmatpush.msra.mxu0 %v1438
        %1738 = vmatpush.msra.mxu0 %v1437
        %1739 = vmatpush.msra.mxu0 %v1436
        %1740 = vmatpush.msra.mxu0 %v1435
        %1741 = vmatpush.msra.mxu0 %v1434
        %1742 = vmatpush.msra.mxu0 %v1433
        %1743 = vmatpush.msra.mxu0 %v1432
        %1744 = vmatpush.msra.mxu0 %v1431
        %1745 = vmatpush.msra.mxu0 %v1430
        %1746 = vmatpush.msra.mxu0 %v1429
        %1747 = vmatpush.msra.mxu0 %v1428
        %1748 = vmatpush.msra.mxu0 %v1427
        %1749 = vmatpush.msra.mxu0 %v1426
        %1750 = vmatmul.f32.gmra.mxu0 %v1230
        %v1751 = vpop.f32.mrf.mxu0
        %v1752 = vadd.f32 %v1732, %v1751
        %1753 = vdwg.mxu0
        %1754 = vmatpush.msra.mxu0 %v1457
        %1755 = vmatpush.msra.mxu0 %v1456
        %1756 = vmatpush.msra.mxu0 %v1455
        %1757 = vmatpush.msra.mxu0 %v1454
        %1758 = vmatpush.msra.mxu0 %v1453
        %1759 = vmatpush.msra.mxu0 %v1452
        %1760 = vmatpush.msra.mxu0 %v1451
        %1761 = vmatpush.msra.mxu0 %v1450
        %1762 = vmatpush.msra.mxu0 %v1449
        %1763 = vmatpush.msra.mxu0 %v1448
        %1764 = vmatpush.msra.mxu0 %v1447
        %1765 = vmatpush.msra.mxu0 %v1446
        %1766 = vmatpush.msra.mxu0 %v1445
        %1767 = vmatpush.msra.mxu0 %v1444
        %1768 = vmatpush.msra.mxu0 %v1443
        %1769 = vmatpush.msra.mxu0 %v1442
        %1770 = vmatmul.f32.gmra.mxu0 %v1231
        %v1771 = vpop.f32.mrf.mxu0
        %v1772 = vadd.f32 %v1752, %v1771
        %1773 = vdwg.mxu0
        %1774 = vmatpush.msra.mxu0 %v1473
        %1775 = vmatpush.msra.mxu0 %v1472
        %1776 = vmatpush.msra.mxu0 %v1471
        %1777 = vmatpush.msra.mxu0 %v1470
        %1778 = vmatpush.msra.mxu0 %v1469
        %1779 = vmatpush.msra.mxu0 %v1468
        %1780 = vmatpush.msra.mxu0 %v1467
        %1781 = vmatpush.msra.mxu0 %v1466
        %1782 = vmatpush.msra.mxu0 %v1465
        %1783 = vmatpush.msra.mxu0 %v1464
        %1784 = vmatpush.msra.mxu0 %v1463
        %1785 = vmatpush.msra.mxu0 %v1462
        %1786 = vmatpush.msra.mxu0 %v1461
        %1787 = vmatpush.msra.mxu0 %v1460
        %1788 = vmatpush.msra.mxu0 %v1459
        %1789 = vmatpush.msra.mxu0 %v1458
        %1790 = vmatmul.f32.gmra.mxu0 %v1232
        %v1791 = vpop.f32.mrf.mxu0
        %v1792 = vadd.f32 %v1772, %v1791
        %1793 = vdwg.mxu0
        %1794 = vmatpush.msra.mxu0 %v1489
        %1795 = vmatpush.msra.mxu0 %v1488
        %1796 = vmatpush.msra.mxu0 %v1487
        %1797 = vmatpush.msra.mxu0 %v1486
        %1798 = vmatpush.msra.mxu0 %v1485
        %1799 = vmatpush.msra.mxu0 %v1484
        %1800 = vmatpush.msra.mxu0 %v1483
        %1801 = vmatpush.msra.mxu0 %v1482
        %1802 = vmatpush.msra.mxu0 %v1481
        %1803 = vmatpush.msra.mxu0 %v1480
        %1804 = vmatpush.msra.mxu0 %v1479
        %1805 = vmatpush.msra.mxu0 %v1478
        %1806 = vmatpush.msra.mxu0 %v1477
        %1807 = vmatpush.msra.mxu0 %v1476
        %1808 = vmatpush.msra.mxu0 %v1475
        %1809 = vmatpush.msra.mxu0 %v1474
        %1810 = vmatmul.f32.gmra.mxu0 %v1233
        %v1811 = vpop.f32.mrf.mxu0
        %v1812 = vadd.f32 %v1792, %v1811
        %1813 = vdwg.mxu0
        %v1814 = vadd.f32 %v794, %v1812
        %v1815 = vld [vmem:[%s16] sm:$0x1]
        %v1816 = vld [vmem:[%s17] sm:$0x1]
        %v1817 = vsel %vm582, %v1814, 0.0
        %1818 = vadd.xlane.f32.xlu0 %v1817
        %v1819 = vpop.xlane.xlu0 %1818
        %v1820 = vmul.f32 %v1819, %v767
        %v1821 = vsub.f32 %v1814, %v1820
        %v1822 = vmul.f32 %v1821, %v1821
        %v1823 = vsel %vm582, %v1822, 0.0
        %1824 = vadd.xlane.f32.xlu0 %v1823
        %v1825 = vpop.xlane.xlu0 %1824
        %v1826 = vmul.f32 %v1825, %v767
        %v1827 = vadd.f32 %v1826, 1e-05
        %v1828 = vrsqrt.pop %v1827
        %v1829 = vmul.f32 %v1828, %v1827
        %v1830 = vmul.f32 %v1829, %v1828
        %v1831 = vmul.f32 0.5, %v1830
        %v1832 = vsub.f32 1.5, %v1831
        %v1833 = vmul.f32 %v1828, %v1832
        %vm1834 = vweird.f32 %v1827
        %vm1835 = vweird.f32 %v1828
        %vm1836 = vmor %vm1834, %vm1835
        %v1837 = vsel %vm1836, %v1828, %v1833
        %v1838 = vmul.f32 %v1821, %v1837
        %v1840 = vperm.slane %v1815, 0
        %v1842 = vmul.f32 %v1838, %v1840
        %v1844 = vperm.slane %v1816, 0
        %v1846 = vadd.f32 %v1842, %v1844
        %1847 = vst.msk [vmem:[%s566] sm:$0xff] %vm582, %v1846
        %s1848 = sand.u32 %s423, 1
        %s1849 = scalar_lea.sflag [#allocation3], %s1848
        %s1850 = sand.u32 %s423, 1
        %s1851 = smul.addr %s1850, 8
        %s1852 = scalar_lea.vmem [#allocation2], %s1851
        // Predicated region
        $region93: #{tpu_custom_call.1} parent=91 // pred_check
          %p1853 = pneg %p433
        $region94: #{tpu_custom_call.1} parent=91 // pred_check_branch
          %1855 = sbr.rel (%p1853) target = $region96
        $region95: #{tpu_custom_call.1} parent=91 // pred_region
          %1857 = vsyncadd %s1849, 0
          %s1858 = smul.addr %s32, 8
          %s1859 = scalar_lea.hbm %s18, %s1858
          %s1861 = sshll.u32 %s1852, 4
          %s1862 = int_to_ptr.vmem [resolvable:$true] %s1861
          %s1863 = sshll.u32 %s1859, 4
          %s1864 = int_to_ptr.hbm [resolvable:$true] %s1863
          %1866 = dma.vmem_to_hbm [thread:$0]  %s1862, 128, %s1864, %s1849
        $region96: #{tpu_custom_call.1} parent=91 // pred_fallthru
          _
      $region92: #{tpu_custom_call.1} parent=5 // pred_fallthru
        _
      %p1867 = scmp.le.s32.totalorder 2, %s27
      // Predicated region
      $region97: #{tpu_custom_call.1} parent=5 // pred_check
        %p1868 = pneg %p1867
      $region98: #{tpu_custom_call.1} parent=5 // pred_check_branch
        %1870 = sbr.rel (%p1868) target = $region100
      $region99: #{tpu_custom_call.1} parent=5 // pred_region
        %s1871 = ssub.s32 %s27, 2
        // Predicated region
        $region101: #{tpu_custom_call.1} parent=99 // pred_check
          %p1872 = pneg %p439
        $region102: #{tpu_custom_call.1} parent=99 // pred_check_branch
          %1874 = sbr.rel (%p1872) target = $region104
        $region103: #{tpu_custom_call.1} parent=99 // pred_region
          %s1875 = sand.u32 %s424, 1
          %s1876 = scalar_lea.sflag [#allocation3], %s1875
          %s1877 = sand.u32 %s424, 1
          %s1878 = smul.addr %s1877, 8
          %s1879 = scalar_lea.vmem [#allocation2], %s1878
          %1881 = dma.done %s1876, 128
        $region104: #{tpu_custom_call.1} parent=99 // pred_fallthru
          _
      $region100: #{tpu_custom_call.1} parent=5 // pred_fallthru
        _
    $region6: #{tpu_custom_call.1} parent=1 // loop_footer
      %s31 = sadd.s32 1, %s27
    $region7: #{tpu_custom_call.1} parent=1 // loop_footer_branch
      %26 = sbr.rel target = $region3
    $region8: #{tpu_custom_call.1} parent=1 // loop_exit
      _
    %1882 = vsyncpa [#allocation3], 1
    %s1883 = scalar_lea.sflag [#allocation3], 1
    %1884 = vsyncpa %s1883, 1

</llo_original>
